<compile_context>
chip_gen: v6e
topology: v6e:2x2x1
jax: 0.10.0
libtpu: 0.0.40
codegen_flags: <defaults>
</compile_context>

<pallas_src>
import jax
import jax.numpy as jnp
from jax.experimental import pallas as pl
from jax.experimental.pallas import tpu as pltpu

EPS = 1e-5


# ---------------------------------------------------------------------------
# Kernel
# ---------------------------------------------------------------------------
def _make_kernel(H, W, Cout, has_skip):
    def kernel(*refs):
        if has_skip:
            x_ref, wb1_ref, wb2_ref, wg_ref, vecs_ref, ws_ref, out_ref = refs
        else:
            x_ref, wb1_ref, wb2_ref, wg_ref, vecs_ref, out_ref = refs

        NH = x_ref.shape[0]           # N * H rows
        Lout = out_ref.shape[-1]      # W * Cout lanes
        inv_m = 1.0 / float(NH * W)   # 1 / (N*H*W)

        x = x_ref[...]                # (NH, W*Cin)

        # Row-within-image index; halo masks computed ONCE, reused by both convs.
        y = jax.lax.broadcasted_iota(jnp.int32, (NH, 1), 0) % H
        top_ok = y >= 1               # row above exists inside the same image
        bot_ok = y <= H - 2           # row below exists inside the same image

        # Per-channel pooling matrix for BN stats: pool[l, l2] = 1 iff lanes
        # l, l2 hold the same channel (lane layout is x*Cout + c).
        li = jax.lax.broadcasted_iota(jnp.int32, (Lout, Lout), 0) % Cout
        lj = jax.lax.broadcasted_iota(jnp.int32, (Lout, Lout), 1) % Cout
        pool = (li == lj).astype(jnp.float32)              # (Lout, Lout)

        # packed per-channel vectors: rows = b1,g1,be1,b2,g2,be2,bg,bs
        b1, g1, be1 = vecs_ref[0:1, :], vecs_ref[1:2, :], vecs_ref[2:3, :]
        b2, g2, be2 = vecs_ref[3:4, :], vecs_ref[4:5, :], vecs_ref[5:6, :]
        bg = vecs_ref[6:7, :]

        def conv3x3(inp, wb_ref, bias):
            # 3 matmuls, one per vertical tap; horizontal taps + SAME padding
            # live inside the banded weight matrices wb_ref[0..2].
            acc = jnp.dot(inp, wb_ref[1], preferred_element_type=jnp.float32)
            up = jnp.where(top_ok, pltpu.roll(inp, shift=1, axis=0), 0.0)
            acc = acc + jnp.dot(up, wb_ref[0],
                                preferred_element_type=jnp.float32)
            dn = jnp.where(bot_ok, pltpu.roll(inp, shift=NH - 1, axis=0), 0.0)
            acc = acc + jnp.dot(dn, wb_ref[2],
                                preferred_element_type=jnp.float32)
            return acc + bias

        def batchnorm(h, gamma, beta):
            # train-mode BN, single pass: var = E[h^2] - mean^2 (biased).
            s1 = jnp.sum(h, axis=0, keepdims=True)         # (1, Lout)
            s2 = jnp.sum(h * h, axis=0, keepdims=True)     # (1, Lout)
            mean = jnp.dot(s1, pool, preferred_element_type=jnp.float32) * inv_m
            ex2 = jnp.dot(s2, pool, preferred_element_type=jnp.float32) * inv_m
            var = ex2 - mean * mean
            scale = gamma * jax.lax.rsqrt(var + EPS)       # (1, Lout) lane-only
            shift = beta - mean * scale                    # (1, Lout) lane-only
            return h * scale + shift                       # 2 VPU ops / element

        # conv1 -> bn1 -> relu
        h = conv3x3(x, wb1_ref, b1)
        h = jnp.maximum(batchnorm(h, g1, be1), 0.0)

        # conv2 -> bn2
        h2 = conv3x3(h, wb2_ref, b2)
        h2 = batchnorm(h2, g2, be2)

        # sigmoid gate: 1x1 conv == block-diagonal matmul in the wide layout
        gate = jax.nn.sigmoid(
            jnp.dot(h2, wg_ref[...], preferred_element_type=jnp.float32) + bg)

        # skip path: real 1x1 conv only when cin != cout, else a plain add
        if has_skip:
            bs = vecs_ref[7:8, :]
            residual = (jnp.dot(x, ws_ref[...],
                                preferred_element_type=jnp.float32) + bs)
        else:
            residual = x

        out_ref[...] = jnp.maximum(h2 * gate + residual, 0.0)  # lane-dense vst

    return kernel


# ---------------------------------------------------------------------------
# Wrapper-side weight re-layout (pure JAX glue, exact: gathers + 0/1 products)
# ---------------------------------------------------------------------------
def _band_conv_weights(w, W):
    """(3,3,Cin,Cout) HWIO kernel -> (3, W*Cin, W*Cout) banded matrices.

    wb[dy][xin*Cin+ci, xo*Cout+co] = w[dy, xin-xo+1, ci, co] for |xin-xo| <= 1.
    """
    _, _, Cin, Cout = w.shape
    xin = jnp.arange(W)[:, None]
    xo = jnp.arange(W)[None, :]
    dx = xin - xo + 1                                           # (W, W)
    valid = ((dx >= 0) & (dx <= 2)).astype(w.dtype)
    dxc = jnp.clip(dx, 0, 2)
    blocks = w[:, dxc, :, :] * valid[None, :, :, None, None]    # (3,W,W,Ci,Co)
    return blocks.transpose(0, 1, 3, 2, 4).reshape(3, W * Cin, W * Cout)


def _blockdiag_1x1(w, W):
    """(Cin, Cout) 1x1-conv matrix -> (W*Cin, W*Cout) block-diagonal matrix."""
    Cin, Cout = w.shape
    eye = jnp.eye(W, dtype=w.dtype)
    return (eye[:, None, :, None] * w[None, :, None, :]).reshape(
        W * Cin, W * Cout)


def gated_residual_block(x_nchw, p):
    N, Cin, H, W = x_nchw.shape
    Cout = p["w1"].shape[-1]
    NH, Lin, Lout = N * H, W * Cin, W * Cout
    has_skip = "ws" in p                      # cin != cout -> 1x1 skip conv

    # NCHW -> NHWC -> wide (N*H, W*C) layout (the reshape is free: same order)
    x_wide = jnp.transpose(x_nchw, (0, 2, 3, 1)).astype(
        jnp.float32).reshape(NH, Lin)

    def lanes(a):                             # per-channel (C,) -> (W*C,)
        return jnp.tile(a.astype(jnp.float32), W)

    wb1 = _band_conv_weights(p["w1"].astype(jnp.float32), W)    # (3, Lin, Lout)
    wb2 = _band_conv_weights(p["w2"].astype(jnp.float32), W)    # (3, Lout, Lout)
    wg = _blockdiag_1x1(p["wg"].astype(jnp.float32), W)         # (Lout, Lout)

    # Pack all per-channel vectors into one (8, Lout) operand -> a single DMA.
    vec_rows = [lanes(p["b1"]), lanes(p["g1"]), lanes(p["be1"]),
                lanes(p["b2"]), lanes(p["g2"]), lanes(p["be2"]),
                lanes(p["bg"]),
                lanes(p["bs"]) if has_skip
                else jnp.zeros((Lout,), jnp.float32)]
    vecs = jnp.stack(vec_rows, axis=0)                          # (8, Lout)

    operands = [x_wide, wb1, wb2, wg, vecs]
    if has_skip:
        operands.append(_blockdiag_1x1(p["ws"].astype(jnp.float32), W))

    def full_spec(a):
        nd = a.ndim
        return pl.BlockSpec(a.shape, lambda i, _nd=nd: (0,) * _nd)

    flops = 2 * NH * Lout * (3 * Lin + 3 * Lout + Lout
                             + (Lin if has_skip else 0))
    bytes_accessed = 4 * (sum(int(a.size) for a in operands) + NH * Lout)
    cost = pl.CostEstimate(flops=flops, transcendentals=NH * Lout,
                           bytes_accessed=bytes_accessed)

    out_wide = pl.pallas_call(
        _make_kernel(H, W, Cout, has_skip),
        out_shape=jax.ShapeDtypeStruct((NH, Lout), jnp.float32),
        grid_spec=pltpu.PrefetchScalarGridSpec(
            num_scalar_prefetch=0,
            grid=(1,),
            in_specs=[full_spec(a) for a in operands],
            out_specs=pl.BlockSpec((NH, Lout), lambda i: (0, 0))),
        compiler_params=pltpu.CompilerParams(
            dimension_semantics=("arbitrary",),
            vmem_limit_bytes=32 * 1024 * 1024),
        cost_estimate=cost,
    )(*operands)

    # TODO(synk): for production H/W/C, tile the grid over N / H rows with a
    # 1-row halo and two-pass (or accumulated) BN stats so the working set
    # fits v7x's 64 MiB VMEM and the row axis can go "parallel" over its 2 TCs.

    return jnp.transpose(out_wide.reshape(N, H, W, Cout), (0, 3, 1, 2))


# ---------------------------------------------------------------------------
# Params + pure-JAX reference (mirrors the PyTorch forward, train-mode BN)
# ---------------------------------------------------------------------------
def init_params(key, cin, cout):
    ks = jax.random.split(key, 12)
    p = {
        "w1": 0.2 * jax.random.normal(ks[0], (3, 3, cin, cout), jnp.float32),
        "b1": 0.1 * jax.random.normal(ks[1], (cout,), jnp.float32),
        "g1": 1.0 + 0.1 * jax.random.normal(ks[2], (cout,), jnp.float32),
        "be1": 0.1 * jax.random.normal(ks[3], (cout,), jnp.float32),
        "w2": 0.2 * jax.random.normal(ks[4], (3, 3, cout, cout), jnp.float32),
        "b2": 0.1 * jax.random.normal(ks[5], (cout,), jnp.float32),
        "g2": 1.0 + 0.1 * jax.random.normal(ks[6], (cout,), jnp.float32),
        "be2": 0.1 * jax.random.normal(ks[7], (cout,), jnp.float32),
        "wg": 0.2 * jax.random.normal(ks[8], (cout, cout), jnp.float32),
        "bg": jnp.zeros((cout,), jnp.float32),
    }
    if cin != cout:   # nn.Identity when cin == cout, else 1x1 conv with bias
        p["ws"] = 0.3 * jax.random.normal(ks[9], (cin, cout), jnp.float32)
        p["bs"] = 0.05 * jax.random.normal(ks[10], (cout,), jnp.float32)
    return p


def reference(x_nchw, p):
    x = jnp.transpose(x_nchw, (0, 2, 3, 1)).astype(jnp.float32)
    hi = jax.lax.Precision.HIGHEST

    def conv3(h, w, b):
        y = jax.lax.conv_general_dilated(
            h, w, window_strides=(1, 1), padding="SAME",
            dimension_numbers=("NHWC", "HWIO", "NHWC"), precision=hi)
        return y + b

    def bn(h, gamma, beta):
        mean = jnp.mean(h, axis=(0, 1, 2), keepdims=True)
        var = jnp.mean((h - mean) ** 2, axis=(0, 1, 2), keepdims=True)
        return (h - mean) * jax.lax.rsqrt(var + EPS) * gamma + beta

    h = jax.nn.relu(bn(conv3(x, p["w1"], p["b1"]), p["g1"], p["be1"]))
    h2 = bn(conv3(h, p["w2"], p["b2"]), p["g2"], p["be2"])
    gate = jax.nn.sigmoid(
        jnp.einsum("nhwc,cd->nhwd", h2, p["wg"], precision=hi) + p["bg"])
    if "ws" in p:
        res = jnp.einsum("nhwc,cd->nhwd", x, p["ws"], precision=hi) + p["bs"]
    else:
        res = x
    out = jax.nn.relu(h2 * gate + res)
    return jnp.transpose(out, (0, 3, 1, 2))


if __name__ == "__main__":
    key = jax.random.PRNGKey(0)
    kx1, kp1, kx2, kp2 = jax.random.split(key, 4)
    grb = jax.jit(gated_residual_block)

    # Case 1: in_channels != out_channels -> exercises the 1x1 skip conv.
    N, Cin, H, W = 2, 4, 16, 16
    Cout = 8
    x1 = jax.random.normal(kx1, (N, Cin, H, W), jnp.float32)
    p1 = init_params(kp1, Cin, Cout)
    out1 = jax.block_until_ready(grb(x1, p1))
    ref1 = jax.block_until_ready(reference(x1, p1))
    assert out1.shape == (N, Cout, H, W), out1.shape
    err1 = float(jnp.max(jnp.abs(out1 - ref1)))
    assert err1 < 2e-3, f"skip-conv case max abs err {err1}"

    # Case 2: in_channels == out_channels -> identity skip (plain add path).
    C = 8
    x2 = jax.random.normal(kx2, (N, C, H, W), jnp.float32)
    p2 = init_params(kp2, C, C)
    out2 = jax.block_until_ready(grb(x2, p2))
    ref2 = jax.block_until_ready(reference(x2, p2))
    assert out2.shape == (N, C, H, W), out2.shape
    err2 = float(jnp.max(jnp.abs(out2 - ref2)))
    assert err2 < 2e-3, f"identity-skip case max abs err {err2}"

    print("KERNEL_OK")
</pallas_src>

<mosaic_0001>
module attributes {stable_mosaic.version = 11 : i64} {
  func.func @kernel(%arg0: i32, %arg1: memref<32x64xf32, #tpu.memory_space<vmem>>, %arg2: memref<3x64x128xf32, #tpu.memory_space<vmem>>, %arg3: memref<3x128x128xf32, #tpu.memory_space<vmem>>, %arg4: memref<128x128xf32, #tpu.memory_space<vmem>>, %arg5: memref<8x128xf32, #tpu.memory_space<vmem>>, %arg6: memref<64x128xf32, #tpu.memory_space<vmem>>, %arg7: memref<32x128xf32, #tpu.memory_space<vmem>>) attributes {dimension_semantics = [#tpu.dimension_semantics<arbitrary>], iteration_bounds = array<i64: 1>, scalar_prefetch = 0 : i64, scratch_operands = 0 : i64, tpu.core_type = #tpu.core_type<tc>, window_params = [{pipeline_mode = #tpu.pipeline_mode<synchronous>, transform_indices = @transform_0, window_bounds = array<i64: 32, 64>}, {pipeline_mode = #tpu.pipeline_mode<synchronous>, transform_indices = @transform_1, window_bounds = array<i64: 3, 64, 128>}, {pipeline_mode = #tpu.pipeline_mode<synchronous>, transform_indices = @transform_2, window_bounds = array<i64: 3, 128, 128>}, {pipeline_mode = #tpu.pipeline_mode<synchronous>, transform_indices = @transform_3, window_bounds = array<i64: 128, 128>}, {pipeline_mode = #tpu.pipeline_mode<synchronous>, transform_indices = @transform_4, window_bounds = array<i64: 8, 128>}, {pipeline_mode = #tpu.pipeline_mode<synchronous>, transform_indices = @transform_5, window_bounds = array<i64: 64, 128>}, {pipeline_mode = #tpu.pipeline_mode<synchronous>, transform_indices = @transform_6, window_bounds = array<i64: 32, 128>}]} {
    %c0 = arith.constant 0 : index
    %c0_0 = arith.constant 0 : index
    %0 = vector.load %arg1[%c0, %c0_0] : memref<32x64xf32, #tpu.memory_space<vmem>>, vector<32x64xf32>
    %1 = tpu.iota {dimensions = array<i32: 0>} : vector<32x1xi32>
    %c16_i32 = arith.constant 16 : i32
    %c0_i32 = arith.constant 0 : i32
    %2 = arith.cmpi eq, %c16_i32, %c0_i32 : i32
    %c1_i32 = arith.constant 1 : i32
    %3 = arith.select %2, %c1_i32, %c16_i32 : i32
    %4 = vector.broadcast %3 : i32 to vector<32x1xi32>
    %5 = arith.remsi %1, %4 : vector<32x1xi32>
    %c0_i32_1 = arith.constant 0 : i32
    %6 = vector.broadcast %c0_i32_1 : i32 to vector<32x1xi32>
    %7 = arith.cmpi ne, %5, %6 : vector<32x1xi32>
    %c0_i32_2 = arith.constant 0 : i32
    %8 = vector.broadcast %c0_i32_2 : i32 to vector<32x1xi32>
    %9 = arith.cmpi slt, %5, %8 : vector<32x1xi32>
    %c0_i32_3 = arith.constant 0 : i32
    %10 = arith.cmpi slt, %3, %c0_i32_3 : i32
    %11 = vector.broadcast %10 : i1 to vector<32x1xi1>
    %12 = vector.broadcast %11 : vector<32x1xi1> to vector<32x1xi1>
    %13 = arith.xori %9, %12 : vector<32x1xi1>
    %14 = arith.andi %13, %7 : vector<32x1xi1>
    %15 = vector.broadcast %3 : i32 to vector<32x1xi32>
    %16 = arith.addi %5, %15 : vector<32x1xi32>
    %17 = arith.select %14, %16, %5 : vector<32x1xi1>, vector<32x1xi32>
    %c1_i32_4 = arith.constant 1 : i32
    %18 = vector.broadcast %c1_i32_4 : i32 to vector<32x1xi32>
    %19 = arith.cmpi sge, %17, %18 : vector<32x1xi32>
    %c14_i32 = arith.constant 14 : i32
    %20 = vector.broadcast %c14_i32 : i32 to vector<32x1xi32>
    %21 = arith.cmpi sle, %17, %20 : vector<32x1xi32>
    %22 = tpu.iota {dimensions = array<i32: 0>} : vector<128x128xi32>
    %c8_i32 = arith.constant 8 : i32
    %c0_i32_5 = arith.constant 0 : i32
    %23 = arith.cmpi eq, %c8_i32, %c0_i32_5 : i32
    %c1_i32_6 = arith.constant 1 : i32
    %24 = arith.select %23, %c1_i32_6, %c8_i32 : i32
    %25 = vector.broadcast %24 : i32 to vector<128x128xi32>
    %26 = arith.remsi %22, %25 : vector<128x128xi32>
    %c0_i32_7 = arith.constant 0 : i32
    %27 = vector.broadcast %c0_i32_7 : i32 to vector<128x128xi32>
    %28 = arith.cmpi ne, %26, %27 : vector<128x128xi32>
    %c0_i32_8 = arith.constant 0 : i32
    %29 = vector.broadcast %c0_i32_8 : i32 to vector<128x128xi32>
    %30 = arith.cmpi slt, %26, %29 : vector<128x128xi32>
    %c0_i32_9 = arith.constant 0 : i32
    %31 = arith.cmpi slt, %24, %c0_i32_9 : i32
    %32 = vector.broadcast %31 : i1 to vector<128x128xi1>
    %33 = vector.broadcast %32 : vector<128x128xi1> to vector<128x128xi1>
    %34 = arith.xori %30, %33 : vector<128x128xi1>
    %35 = arith.andi %34, %28 : vector<128x128xi1>
    %36 = vector.broadcast %24 : i32 to vector<128x128xi32>
    %37 = arith.addi %26, %36 : vector<128x128xi32>
    %38 = arith.select %35, %37, %26 : vector<128x128xi1>, vector<128x128xi32>
    %39 = tpu.iota {dimensions = array<i32: 1>} : vector<128x128xi32>
    %c8_i32_10 = arith.constant 8 : i32
    %c0_i32_11 = arith.constant 0 : i32
    %40 = arith.cmpi eq, %c8_i32_10, %c0_i32_11 : i32
    %c1_i32_12 = arith.constant 1 : i32
    %41 = arith.select %40, %c1_i32_12, %c8_i32_10 : i32
    %42 = vector.broadcast %41 : i32 to vector<128x128xi32>
    %43 = arith.remsi %39, %42 : vector<128x128xi32>
    %c0_i32_13 = arith.constant 0 : i32
    %44 = vector.broadcast %c0_i32_13 : i32 to vector<128x128xi32>
    %45 = arith.cmpi ne, %43, %44 : vector<128x128xi32>
    %c0_i32_14 = arith.constant 0 : i32
    %46 = vector.broadcast %c0_i32_14 : i32 to vector<128x128xi32>
    %47 = arith.cmpi slt, %43, %46 : vector<128x128xi32>
    %c0_i32_15 = arith.constant 0 : i32
    %48 = arith.cmpi slt, %41, %c0_i32_15 : i32
    %49 = vector.broadcast %48 : i1 to vector<128x128xi1>
    %50 = vector.broadcast %49 : vector<128x128xi1> to vector<128x128xi1>
    %51 = arith.xori %47, %50 : vector<128x128xi1>
    %52 = arith.andi %51, %45 : vector<128x128xi1>
    %53 = vector.broadcast %41 : i32 to vector<128x128xi32>
    %54 = arith.addi %43, %53 : vector<128x128xi32>
    %55 = arith.select %52, %54, %43 : vector<128x128xi1>, vector<128x128xi32>
    %56 = arith.cmpi eq, %38, %55 : vector<128x128xi32>
    %57 = arith.extui %56 : vector<128x128xi1> to vector<128x128xi32>
    %58 = arith.sitofp %57 : vector<128x128xi32> to vector<128x128xf32>
    %c0_16 = arith.constant 0 : index
    %c0_17 = arith.constant 0 : index
    %59 = vector.load %arg5[%c0_16, %c0_17] : memref<8x128xf32, #tpu.memory_space<vmem>>, vector<1x128xf32>
    %c1 = arith.constant 1 : index
    %c0_18 = arith.constant 0 : index
    %60 = vector.load %arg5[%c1, %c0_18] : memref<8x128xf32, #tpu.memory_space<vmem>>, vector<1x128xf32>
    %c2 = arith.constant 2 : index
    %c0_19 = arith.constant 0 : index
    %61 = vector.load %arg5[%c2, %c0_19] : memref<8x128xf32, #tpu.memory_space<vmem>>, vector<1x128xf32>
    %c3 = arith.constant 3 : index
    %c0_20 = arith.constant 0 : index
    %62 = vector.load %arg5[%c3, %c0_20] : memref<8x128xf32, #tpu.memory_space<vmem>>, vector<1x128xf32>
    %c4 = arith.constant 4 : index
    %c0_21 = arith.constant 0 : index
    %63 = vector.load %arg5[%c4, %c0_21] : memref<8x128xf32, #tpu.memory_space<vmem>>, vector<1x128xf32>
    %c5 = arith.constant 5 : index
    %c0_22 = arith.constant 0 : index
    %64 = vector.load %arg5[%c5, %c0_22] : memref<8x128xf32, #tpu.memory_space<vmem>>, vector<1x128xf32>
    %c6 = arith.constant 6 : index
    %c0_23 = arith.constant 0 : index
    %65 = vector.load %arg5[%c6, %c0_23] : memref<8x128xf32, #tpu.memory_space<vmem>>, vector<1x128xf32>
    %c1_24 = arith.constant 1 : index
    %c0_25 = arith.constant 0 : index
    %c0_26 = arith.constant 0 : index
    %66 = vector.load %arg2[%c1_24, %c0_25, %c0_26] : memref<3x64x128xf32, #tpu.memory_space<vmem>>, vector<1x64x128xf32>
    %67 = vector.shape_cast %66 : vector<1x64x128xf32> to vector<64x128xf32>
    %cst = arith.constant dense<0.000000e+00> : vector<32x128xf32>
    %68 = tpu.matmul %0, %67, %cst {dimension_numbers = #tpu.dot_dimension_numbers<[1], [0], [0], [1], [0, 0, 1, 1], [], []>} : vector<32x64xf32>, vector<64x128xf32>, vector<32x128xf32> -> vector<32x128xf32>
    %c1_i32_27 = arith.constant 1 : i32
    %69 = tpu.dynamic_rotate %0 by %c1_i32_27 dim 0 : vector<32x64xf32>, i32 -> vector<32x64xf32>
    %cst_28 = arith.constant 0.000000e+00 : f32
    %70 = vector.shape_cast %19 : vector<32x1xi1> to vector<32x1xi1>
    %71 = vector.broadcast %70 : vector<32x1xi1> to vector<32x64xi1>
    %72 = vector.broadcast %cst_28 : f32 to vector<32x64xf32>
    %73 = arith.select %71, %69, %72 : vector<32x64xi1>, vector<32x64xf32>
    %c0_29 = arith.constant 0 : index
    %c0_30 = arith.constant 0 : index
    %c0_31 = arith.constant 0 : index
    %74 = vector.load %arg2[%c0_29, %c0_30, %c0_31] : memref<3x64x128xf32, #tpu.memory_space<vmem>>, vector<1x64x128xf32>
    %75 = vector.shape_cast %74 : vector<1x64x128xf32> to vector<64x128xf32>
    %cst_32 = arith.constant dense<0.000000e+00> : vector<32x128xf32>
    %76 = tpu.matmul %73, %75, %cst_32 {dimension_numbers = #tpu.dot_dimension_numbers<[1], [0], [0], [1], [0, 0, 1, 1], [], []>} : vector<32x64xf32>, vector<64x128xf32>, vector<32x128xf32> -> vector<32x128xf32>
    %77 = arith.addf %68, %76 : vector<32x128xf32>
    %c31_i32 = arith.constant 31 : i32
    %78 = tpu.dynamic_rotate %0 by %c31_i32 dim 0 : vector<32x64xf32>, i32 -> vector<32x64xf32>
    %cst_33 = arith.constant 0.000000e+00 : f32
    %79 = vector.shape_cast %21 : vector<32x1xi1> to vector<32x1xi1>
    %80 = vector.broadcast %79 : vector<32x1xi1> to vector<32x64xi1>
    %81 = vector.broadcast %cst_33 : f32 to vector<32x64xf32>
    %82 = arith.select %80, %78, %81 : vector<32x64xi1>, vector<32x64xf32>
    %c2_34 = arith.constant 2 : index
    %c0_35 = arith.constant 0 : index
    %c0_36 = arith.constant 0 : index
    %83 = vector.load %arg2[%c2_34, %c0_35, %c0_36] : memref<3x64x128xf32, #tpu.memory_space<vmem>>, vector<1x64x128xf32>
    %84 = vector.shape_cast %83 : vector<1x64x128xf32> to vector<64x128xf32>
    %cst_37 = arith.constant dense<0.000000e+00> : vector<32x128xf32>
    %85 = tpu.matmul %82, %84, %cst_37 {dimension_numbers = #tpu.dot_dimension_numbers<[1], [0], [0], [1], [0, 0, 1, 1], [], []>} : vector<32x64xf32>, vector<64x128xf32>, vector<32x128xf32> -> vector<32x128xf32>
    %86 = arith.addf %77, %85 : vector<32x128xf32>
    %87 = vector.broadcast %59 : vector<1x128xf32> to vector<32x128xf32>
    %88 = arith.addf %86, %87 : vector<32x128xf32>
    %cst_38 = arith.constant dense<0.000000e+00> : vector<128xf32>
    %89 = vector.multi_reduction <add>, %88, %cst_38 [0] : vector<32x128xf32> to vector<128xf32>
    %90 = vector.shape_cast %89 : vector<128xf32> to vector<1x128xf32>
    %91 = arith.mulf %88, %88 : vector<32x128xf32>
    %cst_39 = arith.constant dense<0.000000e+00> : vector<128xf32>
    %92 = vector.multi_reduction <add>, %91, %cst_39 [0] : vector<32x128xf32> to vector<128xf32>
    %93 = vector.shape_cast %92 : vector<128xf32> to vector<1x128xf32>
    %cst_40 = arith.constant dense<0.000000e+00> : vector<1x128xf32>
    %94 = tpu.matmul %90, %58, %cst_40 {dimension_numbers = #tpu.dot_dimension_numbers<[1], [0], [0], [1], [0, 0, 1, 1], [], []>} : vector<1x128xf32>, vector<128x128xf32>, vector<1x128xf32> -> vector<1x128xf32>
    %cst_41 = arith.constant 0.001953125 : f32
    %95 = vector.broadcast %cst_41 : f32 to vector<1x128xf32>
    %96 = arith.mulf %94, %95 : vector<1x128xf32>
    %cst_42 = arith.constant dense<0.000000e+00> : vector<1x128xf32>
    %97 = tpu.matmul %93, %58, %cst_42 {dimension_numbers = #tpu.dot_dimension_numbers<[1], [0], [0], [1], [0, 0, 1, 1], [], []>} : vector<1x128xf32>, vector<128x128xf32>, vector<1x128xf32> -> vector<1x128xf32>
    %cst_43 = arith.constant 0.001953125 : f32
    %98 = vector.broadcast %cst_43 : f32 to vector<1x128xf32>
    %99 = arith.mulf %97, %98 : vector<1x128xf32>
    %100 = arith.mulf %96, %96 : vector<1x128xf32>
    %101 = arith.subf %99, %100 : vector<1x128xf32>
    %cst_44 = arith.constant 9.99999974E-6 : f32
    %102 = vector.broadcast %cst_44 : f32 to vector<1x128xf32>
    %103 = arith.addf %101, %102 : vector<1x128xf32>
    %104 = math.rsqrt %103 : vector<1x128xf32>
    %105 = arith.mulf %60, %104 : vector<1x128xf32>
    %106 = arith.mulf %96, %105 : vector<1x128xf32>
    %107 = arith.subf %61, %106 : vector<1x128xf32>
    %108 = vector.broadcast %105 : vector<1x128xf32> to vector<32x128xf32>
    %109 = arith.mulf %88, %108 : vector<32x128xf32>
    %110 = vector.broadcast %107 : vector<1x128xf32> to vector<32x128xf32>
    %111 = arith.addf %109, %110 : vector<32x128xf32>
    %cst_45 = arith.constant 0.000000e+00 : f32
    %112 = vector.broadcast %cst_45 : f32 to vector<32x128xf32>
    %113 = arith.maximumf %111, %112 : vector<32x128xf32>
    %c1_46 = arith.constant 1 : index
    %c0_47 = arith.constant 0 : index
    %c0_48 = arith.constant 0 : index
    %114 = vector.load %arg3[%c1_46, %c0_47, %c0_48] : memref<3x128x128xf32, #tpu.memory_space<vmem>>, vector<1x128x128xf32>
    %115 = vector.shape_cast %114 : vector<1x128x128xf32> to vector<128x128xf32>
    %cst_49 = arith.constant dense<0.000000e+00> : vector<32x128xf32>
    %116 = tpu.matmul %113, %115, %cst_49 {dimension_numbers = #tpu.dot_dimension_numbers<[1], [0], [0], [1], [0, 0, 1, 1], [], []>} : vector<32x128xf32>, vector<128x128xf32>, vector<32x128xf32> -> vector<32x128xf32>
    %c1_i32_50 = arith.constant 1 : i32
    %117 = tpu.dynamic_rotate %113 by %c1_i32_50 dim 0 : vector<32x128xf32>, i32 -> vector<32x128xf32>
    %cst_51 = arith.constant 0.000000e+00 : f32
    %118 = vector.shape_cast %19 : vector<32x1xi1> to vector<32x1xi1>
    %119 = vector.broadcast %118 : vector<32x1xi1> to vector<32x128xi1>
    %120 = vector.broadcast %cst_51 : f32 to vector<32x128xf32>
    %121 = arith.select %119, %117, %120 : vector<32x128xi1>, vector<32x128xf32>
    %c0_52 = arith.constant 0 : index
    %c0_53 = arith.constant 0 : index
    %c0_54 = arith.constant 0 : index
    %122 = vector.load %arg3[%c0_52, %c0_53, %c0_54] : memref<3x128x128xf32, #tpu.memory_space<vmem>>, vector<1x128x128xf32>
    %123 = vector.shape_cast %122 : vector<1x128x128xf32> to vector<128x128xf32>
    %cst_55 = arith.constant dense<0.000000e+00> : vector<32x128xf32>
    %124 = tpu.matmul %121, %123, %cst_55 {dimension_numbers = #tpu.dot_dimension_numbers<[1], [0], [0], [1], [0, 0, 1, 1], [], []>} : vector<32x128xf32>, vector<128x128xf32>, vector<32x128xf32> -> vector<32x128xf32>
    %125 = arith.addf %116, %124 : vector<32x128xf32>
    %c31_i32_56 = arith.constant 31 : i32
    %126 = tpu.dynamic_rotate %113 by %c31_i32_56 dim 0 : vector<32x128xf32>, i32 -> vector<32x128xf32>
    %cst_57 = arith.constant 0.000000e+00 : f32
    %127 = vector.shape_cast %21 : vector<32x1xi1> to vector<32x1xi1>
    %128 = vector.broadcast %127 : vector<32x1xi1> to vector<32x128xi1>
    %129 = vector.broadcast %cst_57 : f32 to vector<32x128xf32>
    %130 = arith.select %128, %126, %129 : vector<32x128xi1>, vector<32x128xf32>
    %c2_58 = arith.constant 2 : index
    %c0_59 = arith.constant 0 : index
    %c0_60 = arith.constant 0 : index
    %131 = vector.load %arg3[%c2_58, %c0_59, %c0_60] : memref<3x128x128xf32, #tpu.memory_space<vmem>>, vector<1x128x128xf32>
    %132 = vector.shape_cast %131 : vector<1x128x128xf32> to vector<128x128xf32>
    %cst_61 = arith.constant dense<0.000000e+00> : vector<32x128xf32>
    %133 = tpu.matmul %130, %132, %cst_61 {dimension_numbers = #tpu.dot_dimension_numbers<[1], [0], [0], [1], [0, 0, 1, 1], [], []>} : vector<32x128xf32>, vector<128x128xf32>, vector<32x128xf32> -> vector<32x128xf32>
    %134 = arith.addf %125, %133 : vector<32x128xf32>
    %135 = vector.broadcast %62 : vector<1x128xf32> to vector<32x128xf32>
    %136 = arith.addf %134, %135 : vector<32x128xf32>
    %cst_62 = arith.constant dense<0.000000e+00> : vector<128xf32>
    %137 = vector.multi_reduction <add>, %136, %cst_62 [0] : vector<32x128xf32> to vector<128xf32>
    %138 = vector.shape_cast %137 : vector<128xf32> to vector<1x128xf32>
    %139 = arith.mulf %136, %136 : vector<32x128xf32>
    %cst_63 = arith.constant dense<0.000000e+00> : vector<128xf32>
    %140 = vector.multi_reduction <add>, %139, %cst_63 [0] : vector<32x128xf32> to vector<128xf32>
    %141 = vector.shape_cast %140 : vector<128xf32> to vector<1x128xf32>
    %cst_64 = arith.constant dense<0.000000e+00> : vector<1x128xf32>
    %142 = tpu.matmul %138, %58, %cst_64 {dimension_numbers = #tpu.dot_dimension_numbers<[1], [0], [0], [1], [0, 0, 1, 1], [], []>} : vector<1x128xf32>, vector<128x128xf32>, vector<1x128xf32> -> vector<1x128xf32>
    %cst_65 = arith.constant 0.001953125 : f32
    %143 = vector.broadcast %cst_65 : f32 to vector<1x128xf32>
    %144 = arith.mulf %142, %143 : vector<1x128xf32>
    %cst_66 = arith.constant dense<0.000000e+00> : vector<1x128xf32>
    %145 = tpu.matmul %141, %58, %cst_66 {dimension_numbers = #tpu.dot_dimension_numbers<[1], [0], [0], [1], [0, 0, 1, 1], [], []>} : vector<1x128xf32>, vector<128x128xf32>, vector<1x128xf32> -> vector<1x128xf32>
    %cst_67 = arith.constant 0.001953125 : f32
    %146 = vector.broadcast %cst_67 : f32 to vector<1x128xf32>
    %147 = arith.mulf %145, %146 : vector<1x128xf32>
    %148 = arith.mulf %144, %144 : vector<1x128xf32>
    %149 = arith.subf %147, %148 : vector<1x128xf32>
    %cst_68 = arith.constant 9.99999974E-6 : f32
    %150 = vector.broadcast %cst_68 : f32 to vector<1x128xf32>
    %151 = arith.addf %149, %150 : vector<1x128xf32>
    %152 = math.rsqrt %151 : vector<1x128xf32>
    %153 = arith.mulf %63, %152 : vector<1x128xf32>
    %154 = arith.mulf %144, %153 : vector<1x128xf32>
    %155 = arith.subf %64, %154 : vector<1x128xf32>
    %156 = vector.broadcast %153 : vector<1x128xf32> to vector<32x128xf32>
    %157 = arith.mulf %136, %156 : vector<32x128xf32>
    %158 = vector.broadcast %155 : vector<1x128xf32> to vector<32x128xf32>
    %159 = arith.addf %157, %158 : vector<32x128xf32>
    %c0_69 = arith.constant 0 : index
    %c0_70 = arith.constant 0 : index
    %160 = vector.load %arg4[%c0_69, %c0_70] : memref<128x128xf32, #tpu.memory_space<vmem>>, vector<128x128xf32>
    %cst_71 = arith.constant dense<0.000000e+00> : vector<32x128xf32>
    %161 = tpu.matmul %159, %160, %cst_71 {dimension_numbers = #tpu.dot_dimension_numbers<[1], [0], [0], [1], [0, 0, 1, 1], [], []>} : vector<32x128xf32>, vector<128x128xf32>, vector<32x128xf32> -> vector<32x128xf32>
    %162 = vector.broadcast %65 : vector<1x128xf32> to vector<32x128xf32>
    %163 = arith.addf %161, %162 : vector<32x128xf32>
    %164 = arith.negf %163 : vector<32x128xf32>
    %165 = math.exp %164 : vector<32x128xf32>
    %cst_72 = arith.constant 1.000000e+00 : f32
    %166 = vector.broadcast %cst_72 : f32 to vector<32x128xf32>
    %167 = arith.addf %166, %165 : vector<32x128xf32>
    %168 = arith.divf %166, %167 : vector<32x128xf32>
    %c7 = arith.constant 7 : index
    %c0_73 = arith.constant 0 : index
    %169 = vector.load %arg5[%c7, %c0_73] : memref<8x128xf32, #tpu.memory_space<vmem>>, vector<1x128xf32>
    %c0_74 = arith.constant 0 : index
    %c0_75 = arith.constant 0 : index
    %170 = vector.load %arg6[%c0_74, %c0_75] : memref<64x128xf32, #tpu.memory_space<vmem>>, vector<64x128xf32>
    %cst_76 = arith.constant dense<0.000000e+00> : vector<32x128xf32>
    %171 = tpu.matmul %0, %170, %cst_76 {dimension_numbers = #tpu.dot_dimension_numbers<[1], [0], [0], [1], [0, 0, 1, 1], [], []>} : vector<32x64xf32>, vector<64x128xf32>, vector<32x128xf32> -> vector<32x128xf32>
    %172 = vector.broadcast %169 : vector<1x128xf32> to vector<32x128xf32>
    %173 = arith.addf %171, %172 : vector<32x128xf32>
    %174 = arith.mulf %159, %168 : vector<32x128xf32>
    %175 = arith.addf %174, %173 : vector<32x128xf32>
    %cst_77 = arith.constant 0.000000e+00 : f32
    %176 = vector.broadcast %cst_77 : f32 to vector<32x128xf32>
    %177 = arith.maximumf %175, %176 : vector<32x128xf32>
    %c0_78 = arith.constant 0 : index
    %c0_79 = arith.constant 0 : index
    %178 = vector.load %arg7[%c0_78, %c0_79] : memref<32x128xf32, #tpu.memory_space<vmem>>, vector<32x128xf32>
    tpu.vector_store %arg7[%c0_78, %c0_79], %177 {strides = array<i32>} : memref<32x128xf32, #tpu.memory_space<vmem>>, vector<32x128xf32>,
    return
  }
  func.func @transform_0(%arg0: i32) -> (i32, i32) {
    %c0_i32 = arith.constant 0 : i32
    %c0_i32_0 = arith.constant 0 : i32
    %c0_i32_1 = arith.constant 0 : i32
    return %c0_i32, %c0_i32_0 : i32, i32
  }
  func.func @transform_1(%arg0: i32) -> (i32, i32, i32) {
    %c0_i32 = arith.constant 0 : i32
    %c0_i32_0 = arith.constant 0 : i32
    %c0_i32_1 = arith.constant 0 : i32
    %c0_i32_2 = arith.constant 0 : i32
    return %c0_i32, %c0_i32_0, %c0_i32_1 : i32, i32, i32
  }
  func.func @transform_2(%arg0: i32) -> (i32, i32, i32) {
    %c0_i32 = arith.constant 0 : i32
    %c0_i32_0 = arith.constant 0 : i32
    %c0_i32_1 = arith.constant 0 : i32
    %c0_i32_2 = arith.constant 0 : i32
    return %c0_i32, %c0_i32_0, %c0_i32_1 : i32, i32, i32
  }
  func.func @transform_3(%arg0: i32) -> (i32, i32) {
    %c0_i32 = arith.constant 0 : i32
    %c0_i32_0 = arith.constant 0 : i32
    %c0_i32_1 = arith.constant 0 : i32
    return %c0_i32, %c0_i32_0 : i32, i32
  }
  func.func @transform_4(%arg0: i32) -> (i32, i32) {
    %c0_i32 = arith.constant 0 : i32
    %c0_i32_0 = arith.constant 0 : i32
    %c0_i32_1 = arith.constant 0 : i32
    return %c0_i32, %c0_i32_0 : i32, i32
  }
  func.func @transform_5(%arg0: i32) -> (i32, i32) {
    %c0_i32 = arith.constant 0 : i32
    %c0_i32_0 = arith.constant 0 : i32
    %c0_i32_1 = arith.constant 0 : i32
    return %c0_i32, %c0_i32_0 : i32, i32
  }
  func.func @transform_6(%arg0: i32) -> (i32, i32) {
    %c0_i32 = arith.constant 0 : i32
    %c0_i32_0 = arith.constant 0 : i32
    %c0_i32_1 = arith.constant 0 : i32
    return %c0_i32, %c0_i32_0 : i32, i32
  }
}

</mosaic_0001>

<llo_original>
// kernel: tile.43
$region0: #{tile.43}
  #allocation0 [shape = 's32[1]{0}', space=sflag, size = 0x4, scoped, tag = 'scoped memory for tile.43']
  %s0 = inlined_call_operand.vmem [shape: f32[8], index: 0, kind: input, shape index: {}]
  %s1 = inlined_call_operand.vmem [shape: f32[16,8], index: 1, kind: output, shape index: {}]
  // Predicated region
  $region2: #{tile.43} parent=0 // pred_check
    _
  $region3: #{tile.43} parent=0 // pred_check_branch
    %3 = sbr.rel (0) target = $region5
  $region4: #{tile.43} parent=0 // pred_region
    _
  $region5: #{tile.43} parent=0 // pred_fallthru
    _
  %v4 = vld [vmem:[%s0] ss:$0 sm:$0xff]
  %5 = vst [vmem:[%s1] sm:$0xff] %v4
  %s6 = scalar_lea.vmem %s1, 8
  %7 = vst [vmem:[%s6] sm:$0xff] %v4

// kernel: tile.72
$region0: #{tile.72}
  %s0 = inlined_call_operand.vmem [shape: f32[16,8], index: 0, kind: input, shape index: {}]
  %s1 = inlined_call_operand.vmem [shape: f32[1,128], index: 1, kind: output, shape index: {}]
  $region1: #{tile.72} parent=0
    #allocation0 [shape = 'u8[4096]{0}', space=vmem, size = 0x1000, scoped, tag = 'scoped mem for output reshape']
    %v2 = vld [vmem:[%s0] sm:$0x1]
    %vm3 = vcmask 64512
    %4 = vst.msk [vmem:[#allocation0] sm:$0x1] %vm3, %v2
    %s5 = scalar_lea.vmem %s0, 15
    %v6 = vld [vmem:[%s5] sm:$0x1]
    %7 = vrot.lane.b32.xlu0 %v6, 120
    %v8 = vpop.permute.xlu0 %7
    %vm9 = vcmask 1048512
    %10 = vst.msk [vmem:[#allocation0] sm:$0x1] %vm9, %v8
    %s11 = scalar_lea.vmem %s0, 14
    %v12 = vld [vmem:[%s11] sm:$0x1]
    %13 = vrot.lane.b32.xlu0 %v12, 112
    %v14 = vpop.permute.xlu0 %13
    %vm15 = vcmask 982912
    %16 = vst.msk [vmem:[#allocation0] sm:$0x1] %vm15, %v14
    %s17 = scalar_lea.vmem %s0, 13
    %v18 = vld [vmem:[%s17] sm:$0x1]
    %19 = vrot.lane.b32.xlu0 %v18, 104
    %v20 = vpop.permute.xlu0 %19
    %vm21 = vcmask 917312
    %22 = vst.msk [vmem:[#allocation0] sm:$0x1] %vm21, %v20
    %s23 = scalar_lea.vmem %s0, 12
    %v24 = vld [vmem:[%s23] sm:$0x1]
    %25 = vrot.lane.b32.xlu0 %v24, 96
    %v26 = vpop.permute.xlu0 %25
    %vm27 = vcmask 851712
    %28 = vst.msk [vmem:[#allocation0] sm:$0x1] %vm27, %v26
    %s29 = scalar_lea.vmem %s0, 11
    %v30 = vld [vmem:[%s29] sm:$0x1]
    %31 = vrot.lane.b32.xlu0 %v30, 88
    %v32 = vpop.permute.xlu0 %31
    %vm33 = vcmask 786112
    %34 = vst.msk [vmem:[#allocation0] sm:$0x1] %vm33, %v32
    %s35 = scalar_lea.vmem %s0, 10
    %v36 = vld [vmem:[%s35] sm:$0x1]
    %37 = vrot.lane.b32.xlu0 %v36, 80
    %v38 = vpop.permute.xlu0 %37
    %vm39 = vcmask 720512
    %40 = vst.msk [vmem:[#allocation0] sm:$0x1] %vm39, %v38
    %s41 = scalar_lea.vmem %s0, 9
    %v42 = vld [vmem:[%s41] sm:$0x1]
    %43 = vrot.lane.b32.xlu0 %v42, 72
    %v44 = vpop.permute.xlu0 %43
    %vm45 = vcmask 654912
    %46 = vst.msk [vmem:[#allocation0] sm:$0x1] %vm45, %v44
    %s47 = scalar_lea.vmem %s0, 8
    %v48 = vld [vmem:[%s47] sm:$0x1]
    %49 = vrot.lane.b32.xlu0 %v48, 64
    %v50 = vpop.permute.xlu0 %49
    %vm51 = vcmask 589312
    %52 = vst.msk [vmem:[#allocation0] sm:$0x1] %vm51, %v50
    %s53 = scalar_lea.vmem %s0, 7
    %v54 = vld [vmem:[%s53] sm:$0x1]
    %55 = vrot.lane.b32.xlu0 %v54, 56
    %v56 = vpop.permute.xlu0 %55
    %vm57 = vcmask 523712
    %58 = vst.msk [vmem:[#allocation0] sm:$0x1] %vm57, %v56
    %s59 = scalar_lea.vmem %s0, 6
    %v60 = vld [vmem:[%s59] sm:$0x1]
    %61 = vrot.lane.b32.xlu0 %v60, 48
    %v62 = vpop.permute.xlu0 %61
    %vm63 = vcmask 458112
    %64 = vst.msk [vmem:[#allocation0] sm:$0x1] %vm63, %v62
    %s65 = scalar_lea.vmem %s0, 5
    %v66 = vld [vmem:[%s65] sm:$0x1]
    %67 = vrot.lane.b32.xlu0 %v66, 40
    %v68 = vpop.permute.xlu0 %67
    %vm69 = vcmask 392512
    %70 = vst.msk [vmem:[#allocation0] sm:$0x1] %vm69, %v68
    %s71 = scalar_lea.vmem %s0, 4
    %v72 = vld [vmem:[%s71] sm:$0x1]
    %73 = vrot.lane.b32.xlu0 %v72, 32
    %v74 = vpop.permute.xlu0 %73
    %vm75 = vcmask 326912
    %76 = vst.msk [vmem:[#allocation0] sm:$0x1] %vm75, %v74
    %s77 = scalar_lea.vmem %s0, 3
    %v78 = vld [vmem:[%s77] sm:$0x1]
    %79 = vrot.lane.b32.xlu0 %v78, 24
    %v80 = vpop.permute.xlu0 %79
    %vm81 = vcmask 261312
    %82 = vst.msk [vmem:[#allocation0] sm:$0x1] %vm81, %v80
    %s83 = scalar_lea.vmem %s0, 2
    %v84 = vld [vmem:[%s83] sm:$0x1]
    %85 = vrot.lane.b32.xlu0 %v84, 16
    %v86 = vpop.permute.xlu0 %85
    %vm87 = vcmask 195712
    %88 = vst.msk [vmem:[#allocation0] sm:$0x1] %vm87, %v86
    %s89 = scalar_lea.vmem %s0, 1
    %v90 = vld [vmem:[%s89] sm:$0x1]
    %91 = vrot.lane.b32.xlu0 %v90, 8
    %v92 = vpop.permute.xlu0 %91
    %vm93 = vcmask 130112
    %94 = vst.msk [vmem:[#allocation0] sm:$0x1] %vm93, %v92
    %s96 = sshll.u32 1, 1
    %s97 = ssub.s32 %s96, 1
    %v99 = vld [vmem:[#allocation0] sm:%s97]
    %s100 = sshll.u32 1, 1
    %s101 = ssub.s32 %s100, 1
    %102 = vst [vmem:[%s1] sm:%s101] %v99

// kernel: gated_residual_block.1
$region0: #{gated_residual_block.1}
  #allocation0 [shape = 'u32[]', space=smem, size = 0x4, offset = 0x4, fixed_abs, tag = 'smem constant byte address 0x4 - core index']
  #allocation1 [shape = 'u32[144,128]{1,0:T(1,128)}', space=vmem, size = 0x12000, scoped, tag = 'internal scratch']
  %s0 = inlined_call_operand.vmem [shape: f32[32,64], index: 0, kind: input, shape index: {}]
  %s1 = inlined_call_operand.vmem [shape: f32[3,64,128], index: 1, kind: input, shape index: {}]
  %s2 = inlined_call_operand.vmem [shape: f32[3,128,128], index: 2, kind: input, shape index: {}]
  %s3 = inlined_call_operand.vmem [shape: f32[128,128], index: 3, kind: input, shape index: {}]
  %s4 = inlined_call_operand.vmem [shape: f32[8,128], index: 4, kind: input, shape index: {}]
  %s5 = inlined_call_operand.vmem [shape: f32[64,128], index: 5, kind: input, shape index: {}]
  %s6 = inlined_call_operand.vmem [shape: f32[32,128], index: 6, kind: output, shape index: {}]
  %s7 = sld [smem:[#allocation0]]
  $region34: #{gated_residual_block.1} parent=0
    _
  %s9 = ssub.s32 1, %s7
  %s10 = scalar_select 0, %s9, %s7
  // Predicated region
  $region2: #{gated_residual_block.1} parent=0 // pred_check
    _
  $region3: #{gated_residual_block.1} parent=0 // pred_check_branch
    %12 = sbr.rel (0) target = $region5
  $region4: #{gated_residual_block.1} parent=0 // pred_region
    _
  $region5: #{gated_residual_block.1} parent=0 // pred_fallthru
    _
  // Predicated region
  $region6: #{gated_residual_block.1} parent=0 // pred_check
    _
  $region7: #{gated_residual_block.1} parent=0 // pred_check_branch
    %14 = sbr.rel (0) target = $region9
  $region8: #{gated_residual_block.1} parent=0 // pred_region
    _
  $region9: #{gated_residual_block.1} parent=0 // pred_fallthru
    _
  // Predicated region
  $region10: #{gated_residual_block.1} parent=0 // pred_check
    _
  $region11: #{gated_residual_block.1} parent=0 // pred_check_branch
    %16 = sbr.rel (0) target = $region13
  $region12: #{gated_residual_block.1} parent=0 // pred_region
    _
  $region13: #{gated_residual_block.1} parent=0 // pred_fallthru
    _
  // Predicated region
  $region14: #{gated_residual_block.1} parent=0 // pred_check
    _
  $region15: #{gated_residual_block.1} parent=0 // pred_check_branch
    %18 = sbr.rel (0) target = $region17
  $region16: #{gated_residual_block.1} parent=0 // pred_region
    _
  $region17: #{gated_residual_block.1} parent=0 // pred_fallthru
    _
  // Predicated region
  $region18: #{gated_residual_block.1} parent=0 // pred_check
    _
  $region19: #{gated_residual_block.1} parent=0 // pred_check_branch
    %20 = sbr.rel (0) target = $region21
  $region20: #{gated_residual_block.1} parent=0 // pred_region
    _
  $region21: #{gated_residual_block.1} parent=0 // pred_fallthru
    _
  // Predicated region
  $region22: #{gated_residual_block.1} parent=0 // pred_check
    _
  $region23: #{gated_residual_block.1} parent=0 // pred_check_branch
    %22 = sbr.rel (0) target = $region25
  $region24: #{gated_residual_block.1} parent=0 // pred_region
    _
  $region25: #{gated_residual_block.1} parent=0 // pred_fallthru
    _
  %v23 = vld [vmem:[%s0] sm:$0xff]
  %v24 = vld [vmem:[%s0 + $0x8] sm:$0xff]
  %v25 = vld [vmem:[%s0 + $0x10] sm:$0xff]
  %v26 = vld [vmem:[%s0 + $0x18] sm:$0xff]
  %v27 = vlaneseq
  %v28 = vshrl.u32 %v27, 7
  %v29 = vadd.s32 %v28, 8
  %v30 = vadd.s32 %v28, 16
  %v31 = vadd.s32 %v28, 24
  %vm32 = vcmp.lt.s32.totalorder %v28, 0
  %v33 = vsub.s32 0, %v28
  %v34 = vsel %vm32, %v33, %v28
  %v35 = vshrl.u32 %v34, 4
  %v36 = vand.u32 %v34, 15
  %v37 = vsub.s32 0, %v36
  %v38 = vsel %vm32, %v37, %v36
  %vm39 = vcmp.lt.s32.totalorder %v29, 0
  %v40 = vsub.s32 0, %v29
  %v41 = vsel %vm39, %v40, %v29
  %v42 = vshrl.u32 %v41, 4
  %v43 = vand.u32 %v41, 15
  %v44 = vsub.s32 0, %v43
  %v45 = vsel %vm39, %v44, %v43
  %vm46 = vcmp.lt.s32.totalorder %v30, 0
  %v47 = vsub.s32 0, %v30
  %v48 = vsel %vm46, %v47, %v30
  %v49 = vshrl.u32 %v48, 4
  %v50 = vand.u32 %v48, 15
  %v51 = vsub.s32 0, %v50
  %v52 = vsel %vm46, %v51, %v50
  %vm53 = vcmp.lt.s32.totalorder %v31, 0
  %v54 = vsub.s32 0, %v31
  %v55 = vsel %vm53, %v54, %v31
  %v56 = vshrl.u32 %v55, 4
  %v57 = vand.u32 %v55, 15
  %v58 = vsub.s32 0, %v57
  %v59 = vsel %vm53, %v58, %v57
  %vm60 = vcmp.ne.s32.totalorder %v38, 0
  %vm61 = vcmp.ne.s32.totalorder %v45, 0
  %vm62 = vcmp.ne.s32.totalorder %v52, 0
  %vm63 = vcmp.ne.s32.totalorder %v59, 0
  %vm64 = vcmp.lt.s32.totalorder %v38, 0
  %vm65 = vcmp.lt.s32.totalorder %v45, 0
  %vm66 = vcmp.lt.s32.totalorder %v52, 0
  %vm67 = vcmp.lt.s32.totalorder %v59, 0
  %vm68 = vmand %vm64, %vm60
  %vm69 = vmand %vm65, %vm61
  %vm70 = vmand %vm66, %vm62
  %vm71 = vmand %vm67, %vm63
  %v72 = vadd.s32 %v38, 16
  %v73 = vadd.s32 %v45, 16
  %v74 = vadd.s32 %v52, 16
  %v75 = vadd.s32 %v59, 16
  %v76 = vsel %vm68, %v72, %v38
  %v77 = vsel %vm69, %v73, %v45
  %v78 = vsel %vm70, %v74, %v52
  %v79 = vsel %vm71, %v75, %v59
  %vm80 = vcmp.ge.s32.totalorder %v76, 1
  %vm81 = vcmp.ge.s32.totalorder %v77, 1
  %vm82 = vcmp.ge.s32.totalorder %v78, 1
  %vm83 = vcmp.ge.s32.totalorder %v79, 1
  %vm84 = vcmp.le.s32.totalorder %v76, 14
  %vm85 = vcmp.le.s32.totalorder %v77, 14
  %vm86 = vcmp.le.s32.totalorder %v78, 14
  %vm87 = vcmp.le.s32.totalorder %v79, 14
  %v88 = vadd.s32 %v28, 32
  %v89 = vadd.s32 %v28, 40
  %v90 = vadd.s32 %v28, 48
  %v91 = vadd.s32 %v28, 56
  %v92 = vadd.s32 %v28, 64
  %v93 = vadd.s32 %v28, 72
  %v94 = vadd.s32 %v28, 80
  %v95 = vadd.s32 %v28, 88
  %v96 = vadd.s32 %v28, 96
  %v97 = vadd.s32 %v28, 104
  %v98 = vadd.s32 %v28, 112
  %v99 = vadd.s32 %v28, 120
  %vm100 = vcmp.lt.s32.totalorder %v28, 0
  %v101 = vsub.s32 0, %v28
  %v102 = vsel %vm100, %v101, %v28
  %v103 = vshrl.u32 %v102, 3
  %v104 = vand.u32 %v102, 7
  %v105 = vsub.s32 0, %v104
  %v106 = vsel %vm100, %v105, %v104
  %vm107 = vcmp.lt.s32.totalorder %v29, 0
  %v108 = vsub.s32 0, %v29
  %v109 = vsel %vm107, %v108, %v29
  %v110 = vshrl.u32 %v109, 3
  %v111 = vand.u32 %v109, 7
  %v112 = vsub.s32 0, %v111
  %v113 = vsel %vm107, %v112, %v111
  %vm114 = vcmp.lt.s32.totalorder %v30, 0
  %v115 = vsub.s32 0, %v30
  %v116 = vsel %vm114, %v115, %v30
  %v117 = vshrl.u32 %v116, 3
  %v118 = vand.u32 %v116, 7
  %v119 = vsub.s32 0, %v118
  %v120 = vsel %vm114, %v119, %v118
  %vm121 = vcmp.lt.s32.totalorder %v31, 0
  %v122 = vsub.s32 0, %v31
  %v123 = vsel %vm121, %v122, %v31
  %v124 = vshrl.u32 %v123, 3
  %v125 = vand.u32 %v123, 7
  %v126 = vsub.s32 0, %v125
  %v127 = vsel %vm121, %v126, %v125
  %vm128 = vcmp.lt.s32.totalorder %v88, 0
  %v129 = vsub.s32 0, %v88
  %v130 = vsel %vm128, %v129, %v88
  %v131 = vshrl.u32 %v130, 3
  %v132 = vand.u32 %v130, 7
  %v133 = vsub.s32 0, %v132
  %v134 = vsel %vm128, %v133, %v132
  %vm135 = vcmp.lt.s32.totalorder %v89, 0
  %v136 = vsub.s32 0, %v89
  %v137 = vsel %vm135, %v136, %v89
  %v138 = vshrl.u32 %v137, 3
  %v139 = vand.u32 %v137, 7
  %v140 = vsub.s32 0, %v139
  %v141 = vsel %vm135, %v140, %v139
  %vm142 = vcmp.lt.s32.totalorder %v90, 0
  %v143 = vsub.s32 0, %v90
  %v144 = vsel %vm142, %v143, %v90
  %v145 = vshrl.u32 %v144, 3
  %v146 = vand.u32 %v144, 7
  %v147 = vsub.s32 0, %v146
  %v148 = vsel %vm142, %v147, %v146
  %vm149 = vcmp.lt.s32.totalorder %v91, 0
  %v150 = vsub.s32 0, %v91
  %v151 = vsel %vm149, %v150, %v91
  %v152 = vshrl.u32 %v151, 3
  %v153 = vand.u32 %v151, 7
  %v154 = vsub.s32 0, %v153
  %v155 = vsel %vm149, %v154, %v153
  %vm156 = vcmp.lt.s32.totalorder %v92, 0
  %v157 = vsub.s32 0, %v92
  %v158 = vsel %vm156, %v157, %v92
  %v159 = vshrl.u32 %v158, 3
  %v160 = vand.u32 %v158, 7
  %v161 = vsub.s32 0, %v160
  %v162 = vsel %vm156, %v161, %v160
  %vm163 = vcmp.lt.s32.totalorder %v93, 0
  %v164 = vsub.s32 0, %v93
  %v165 = vsel %vm163, %v164, %v93
  %v166 = vshrl.u32 %v165, 3
  %v167 = vand.u32 %v165, 7
  %v168 = vsub.s32 0, %v167
  %v169 = vsel %vm163, %v168, %v167
  %vm170 = vcmp.lt.s32.totalorder %v94, 0
  %v171 = vsub.s32 0, %v94
  %v172 = vsel %vm170, %v171, %v94
  %v173 = vshrl.u32 %v172, 3
  %v174 = vand.u32 %v172, 7
  %v175 = vsub.s32 0, %v174
  %v176 = vsel %vm170, %v175, %v174
  %vm177 = vcmp.lt.s32.totalorder %v95, 0
  %v178 = vsub.s32 0, %v95
  %v179 = vsel %vm177, %v178, %v95
  %v180 = vshrl.u32 %v179, 3
  %v181 = vand.u32 %v179, 7
  %v182 = vsub.s32 0, %v181
  %v183 = vsel %vm177, %v182, %v181
  %vm184 = vcmp.lt.s32.totalorder %v96, 0
  %v185 = vsub.s32 0, %v96
  %v186 = vsel %vm184, %v185, %v96
  %v187 = vshrl.u32 %v186, 3
  %v188 = vand.u32 %v186, 7
  %v189 = vsub.s32 0, %v188
  %v190 = vsel %vm184, %v189, %v188
  %vm191 = vcmp.lt.s32.totalorder %v97, 0
  %v192 = vsub.s32 0, %v97
  %v193 = vsel %vm191, %v192, %v97
  %v194 = vshrl.u32 %v193, 3
  %v195 = vand.u32 %v193, 7
  %v196 = vsub.s32 0, %v195
  %v197 = vsel %vm191, %v196, %v195
  %vm198 = vcmp.lt.s32.totalorder %v98, 0
  %v199 = vsub.s32 0, %v98
  %v200 = vsel %vm198, %v199, %v98
  %v201 = vshrl.u32 %v200, 3
  %v202 = vand.u32 %v200, 7
  %v203 = vsub.s32 0, %v202
  %v204 = vsel %vm198, %v203, %v202
  %vm205 = vcmp.lt.s32.totalorder %v99, 0
  %v206 = vsub.s32 0, %v99
  %v207 = vsel %vm205, %v206, %v99
  %v208 = vshrl.u32 %v207, 3
  %v209 = vand.u32 %v207, 7
  %v210 = vsub.s32 0, %v209
  %v211 = vsel %vm205, %v210, %v209
  %vm212 = vcmp.ne.s32.totalorder %v106, 0
  %vm213 = vcmp.ne.s32.totalorder %v113, 0
  %vm214 = vcmp.ne.s32.totalorder %v120, 0
  %vm215 = vcmp.ne.s32.totalorder %v127, 0
  %vm216 = vcmp.ne.s32.totalorder %v134, 0
  %vm217 = vcmp.ne.s32.totalorder %v141, 0
  %vm218 = vcmp.ne.s32.totalorder %v148, 0
  %vm219 = vcmp.ne.s32.totalorder %v155, 0
  %vm220 = vcmp.ne.s32.totalorder %v162, 0
  %vm221 = vcmp.ne.s32.totalorder %v169, 0
  %vm222 = vcmp.ne.s32.totalorder %v176, 0
  %vm223 = vcmp.ne.s32.totalorder %v183, 0
  %vm224 = vcmp.ne.s32.totalorder %v190, 0
  %vm225 = vcmp.ne.s32.totalorder %v197, 0
  %vm226 = vcmp.ne.s32.totalorder %v204, 0
  %vm227 = vcmp.ne.s32.totalorder %v211, 0
  %vm228 = vcmp.lt.s32.totalorder %v106, 0
  %vm229 = vcmp.lt.s32.totalorder %v113, 0
  %vm230 = vcmp.lt.s32.totalorder %v120, 0
  %vm231 = vcmp.lt.s32.totalorder %v127, 0
  %vm232 = vcmp.lt.s32.totalorder %v134, 0
  %vm233 = vcmp.lt.s32.totalorder %v141, 0
  %vm234 = vcmp.lt.s32.totalorder %v148, 0
  %vm235 = vcmp.lt.s32.totalorder %v155, 0
  %vm236 = vcmp.lt.s32.totalorder %v162, 0
  %vm237 = vcmp.lt.s32.totalorder %v169, 0
  %vm238 = vcmp.lt.s32.totalorder %v176, 0
  %vm239 = vcmp.lt.s32.totalorder %v183, 0
  %vm240 = vcmp.lt.s32.totalorder %v190, 0
  %vm241 = vcmp.lt.s32.totalorder %v197, 0
  %vm242 = vcmp.lt.s32.totalorder %v204, 0
  %vm243 = vcmp.lt.s32.totalorder %v211, 0
  %vm244 = vmand %vm228, %vm212
  %vm245 = vmand %vm229, %vm213
  %vm246 = vmand %vm230, %vm214
  %vm247 = vmand %vm231, %vm215
  %vm248 = vmand %vm232, %vm216
  %vm249 = vmand %vm233, %vm217
  %vm250 = vmand %vm234, %vm218
  %vm251 = vmand %vm235, %vm219
  %vm252 = vmand %vm236, %vm220
  %vm253 = vmand %vm237, %vm221
  %vm254 = vmand %vm238, %vm222
  %vm255 = vmand %vm239, %vm223
  %vm256 = vmand %vm240, %vm224
  %vm257 = vmand %vm241, %vm225
  %vm258 = vmand %vm242, %vm226
  %vm259 = vmand %vm243, %vm227
  %v260 = vadd.s32 %v106, 8
  %v261 = vadd.s32 %v113, 8
  %v262 = vadd.s32 %v120, 8
  %v263 = vadd.s32 %v127, 8
  %v264 = vadd.s32 %v134, 8
  %v265 = vadd.s32 %v141, 8
  %v266 = vadd.s32 %v148, 8
  %v267 = vadd.s32 %v155, 8
  %v268 = vadd.s32 %v162, 8
  %v269 = vadd.s32 %v169, 8
  %v270 = vadd.s32 %v176, 8
  %v271 = vadd.s32 %v183, 8
  %v272 = vadd.s32 %v190, 8
  %v273 = vadd.s32 %v197, 8
  %v274 = vadd.s32 %v204, 8
  %v275 = vadd.s32 %v211, 8
  %v276 = vsel %vm244, %v260, %v106
  %v277 = vsel %vm245, %v261, %v113
  %v278 = vsel %vm246, %v262, %v120
  %v279 = vsel %vm247, %v263, %v127
  %v280 = vsel %vm248, %v264, %v134
  %v281 = vsel %vm249, %v265, %v141
  %v282 = vsel %vm250, %v266, %v148
  %v283 = vsel %vm251, %v267, %v155
  %v284 = vsel %vm252, %v268, %v162
  %v285 = vsel %vm253, %v269, %v169
  %v286 = vsel %vm254, %v270, %v176
  %v287 = vsel %vm255, %v271, %v183
  %v288 = vsel %vm256, %v272, %v190
  %v289 = vsel %vm257, %v273, %v197
  %v290 = vsel %vm258, %v274, %v204
  %v291 = vsel %vm259, %v275, %v211
  %v292 = vlaneseq
  %v293 = vand.u32 %v292, 127
  %vm294 = vcmp.lt.s32.totalorder %v293, 0
  %v295 = vsub.s32 0, %v293
  %v296 = vsel %vm294, %v295, %v293
  %v297 = vshrl.u32 %v296, 3
  %v298 = vand.u32 %v296, 7
  %v299 = vsub.s32 0, %v298
  %v300 = vsel %vm294, %v299, %v298
  %vm301 = vcmp.ne.s32.totalorder %v300, 0
  %vm302 = vcmp.lt.s32.totalorder %v300, 0
  %vm303 = vmand %vm302, %vm301
  %v304 = vadd.s32 %v300, 8
  %v305 = vsel %vm303, %v304, %v300
  %vm306 = vcmp.eq.s32.totalorder %v276, %v305
  %vm307 = vcmp.eq.s32.totalorder %v277, %v305
  %vm308 = vcmp.eq.s32.totalorder %v278, %v305
  %vm309 = vcmp.eq.s32.totalorder %v279, %v305
  %vm310 = vcmp.eq.s32.totalorder %v280, %v305
  %vm311 = vcmp.eq.s32.totalorder %v281, %v305
  %vm312 = vcmp.eq.s32.totalorder %v282, %v305
  %vm313 = vcmp.eq.s32.totalorder %v283, %v305
  %vm314 = vcmp.eq.s32.totalorder %v284, %v305
  %vm315 = vcmp.eq.s32.totalorder %v285, %v305
  %vm316 = vcmp.eq.s32.totalorder %v286, %v305
  %vm317 = vcmp.eq.s32.totalorder %v287, %v305
  %vm318 = vcmp.eq.s32.totalorder %v288, %v305
  %vm319 = vcmp.eq.s32.totalorder %v289, %v305
  %vm320 = vcmp.eq.s32.totalorder %v290, %v305
  %vm321 = vcmp.eq.s32.totalorder %v291, %v305
  %v322 = vsel %vm306, 1, 0
  %v323 = vsel %vm307, 1, 0
  %v324 = vsel %vm308, 1, 0
  %v325 = vsel %vm309, 1, 0
  %v326 = vsel %vm310, 1, 0
  %v327 = vsel %vm311, 1, 0
  %v328 = vsel %vm312, 1, 0
  %v329 = vsel %vm313, 1, 0
  %v330 = vsel %vm314, 1, 0
  %v331 = vsel %vm315, 1, 0
  %v332 = vsel %vm316, 1, 0
  %v333 = vsel %vm317, 1, 0
  %v334 = vsel %vm318, 1, 0
  %v335 = vsel %vm319, 1, 0
  %v336 = vsel %vm320, 1, 0
  %v337 = vsel %vm321, 1, 0
  %v338 = vcvt.s32.f32 %v322
  %v339 = vcvt.s32.f32 %v323
  %v340 = vcvt.s32.f32 %v324
  %v341 = vcvt.s32.f32 %v325
  %v342 = vcvt.s32.f32 %v326
  %v343 = vcvt.s32.f32 %v327
  %v344 = vcvt.s32.f32 %v328
  %v345 = vcvt.s32.f32 %v329
  %v346 = vcvt.s32.f32 %v330
  %v347 = vcvt.s32.f32 %v331
  %v348 = vcvt.s32.f32 %v332
  %v349 = vcvt.s32.f32 %v333
  %v350 = vcvt.s32.f32 %v334
  %v351 = vcvt.s32.f32 %v335
  %v352 = vcvt.s32.f32 %v336
  %v353 = vcvt.s32.f32 %v337
  %v354 = vld [vmem:[%s4] sm:$0x1]
  %v355 = vld [vmem:[%s4 + $0x1] sm:$0x1]
  %v356 = vld [vmem:[%s4 + $0x2] sm:$0x1]
  %v357 = vld [vmem:[%s4 + $0x3] sm:$0x1]
  %v358 = vld [vmem:[%s4 + $0x4] sm:$0x1]
  %v359 = vld [vmem:[%s4 + $0x5] sm:$0x1]
  %v360 = vld [vmem:[%s4 + $0x6] sm:$0x1]
  %s361 = scalar_lea.vmem %s1, 64
  %v362 = vld [vmem:[%s361] sm:$0xff]
  %v363 = vld [vmem:[%s361 + $0x8] sm:$0xff]
  %v364 = vld [vmem:[%s361 + $0x10] sm:$0xff]
  %v365 = vld [vmem:[%s361 + $0x18] sm:$0xff]
  %v366 = vld [vmem:[%s361 + $0x20] sm:$0xff]
  %v367 = vld [vmem:[%s361 + $0x28] sm:$0xff]
  %v368 = vld [vmem:[%s361 + $0x30] sm:$0xff]
  %v369 = vld [vmem:[%s361 + $0x38] sm:$0xff]
  %v370 = vrot.slane %v23, 7
  %v371 = vrot.slane %v24, 7
  %v372 = vrot.slane %v25, 7
  %v373 = vrot.slane %v26, 7
  %vm374 = vcmp.lt.s32.totalorder %v28, 1
  %v375 = vsel %vm374, %v372, %v373
  %v376 = vsel %vm374, %v371, %v372
  %v377 = vsel %vm374, %v370, %v371
  %v378 = vsel %vm374, %v373, %v370
  %v379 = vsel %vm80, 1, 0
  %v380 = vsel %vm81, 1, 0
  %v381 = vsel %vm82, 1, 0
  %v382 = vsel %vm83, 1, 0
  %vm383 = vcmp.eq.s32.totalorder %v379, 1
  %vm384 = vcmp.eq.s32.totalorder %v380, 1
  %vm385 = vcmp.eq.s32.totalorder %v381, 1
  %vm386 = vcmp.eq.s32.totalorder %v382, 1
  %v387 = vsel %vm383, %v378, 0.0
  %v388 = vsel %vm384, %v377, 0.0
  %v389 = vsel %vm385, %v376, 0.0
  %v390 = vsel %vm386, %v375, 0.0
  %v391 = vld [vmem:[%s1] sm:$0xff]
  %v392 = vld [vmem:[%s1 + $0x8] sm:$0xff]
  %v393 = vld [vmem:[%s1 + $0x10] sm:$0xff]
  %v394 = vld [vmem:[%s1 + $0x18] sm:$0xff]
  %v395 = vld [vmem:[%s1 + $0x20] sm:$0xff]
  %v396 = vld [vmem:[%s1 + $0x28] sm:$0xff]
  %v397 = vld [vmem:[%s1 + $0x30] sm:$0xff]
  %v398 = vld [vmem:[%s1 + $0x38] sm:$0xff]
  %vm399 = vcmask 523264
  %v401 = vsel %vm399, %v387, 0
  %v404 = vsel %vm399, %v388, 0
  %v407 = vsel %vm399, %v389, 0
  %v410 = vsel %vm399, %v390, 0
  %412 = vmatprep.subr.mxu0 0.0
  %413 = vmatpush1.msra.mxu0 0.0
  %414 = vmatprep.subr.mxu0 0.0
  %415 = vmatpush1.msra.mxu0 0.0
  %416 = vmatprep.subr.mxu0 0.0
  %417 = vmatpush1.msra.mxu0 0.0
  %418 = vmatprep.subr.mxu0 0.0
  %419 = vmatpush1.msra.mxu0 0.0
  %420 = vmatprep.subr.mxu0 0.0
  %421 = vmatpush1.msra.mxu0 0.0
  %422 = vmatprep.subr.mxu0 0.0
  %423 = vmatpush1.msra.mxu0 0.0
  %424 = vmatprep.subr.mxu0 0.0
  %425 = vmatpush1.msra.mxu0 0.0
  %426 = vmatprep.subr.mxu0 0.0
  %427 = vmatpush1.msra.mxu0 0.0
  %428 = vmatprep.subr.mxu0 0.0
  %429 = vmatpush1.msra.mxu0 %v398
  %430 = vmatprep.subr.mxu0 0.0
  %431 = vmatpush1.msra.mxu0 %v397
  %432 = vmatprep.subr.mxu0 0.0
  %433 = vmatpush1.msra.mxu0 %v396
  %434 = vmatprep.subr.mxu0 0.0
  %435 = vmatpush1.msra.mxu0 %v395
  %436 = vmatprep.subr.mxu0 0.0
  %437 = vmatpush1.msra.mxu0 %v394
  %438 = vmatprep.subr.mxu0 0.0
  %439 = vmatpush1.msra.mxu0 %v393
  %440 = vmatprep.subr.mxu0 0.0
  %441 = vmatpush1.msra.mxu0 %v392
  %442 = vmatprep.subr.mxu0 0.0
  %443 = vmatpush1.msra.mxu0 %v391
  %444 = vmatprep.subr.mxu0 0.0
  %445 = vmatpush2.msra.mxu0 0.0
  %446 = vmatprep.subr.mxu0 0.0
  %447 = vmatpush2.msra.mxu0 0.0
  %448 = vmatprep.subr.mxu0 0.0
  %449 = vmatpush2.msra.mxu0 0.0
  %450 = vmatprep.subr.mxu0 0.0
  %451 = vmatpush2.msra.mxu0 0.0
  %452 = vmatprep.subr.mxu0 0.0
  %453 = vmatpush2.msra.mxu0 0.0
  %454 = vmatprep.subr.mxu0 0.0
  %455 = vmatpush2.msra.mxu0 0.0
  %456 = vmatprep.subr.mxu0 0.0
  %457 = vmatpush2.msra.mxu0 0.0
  %458 = vmatprep.subr.mxu0 0.0
  %459 = vmatpush2.msra.mxu0 0.0
  %460 = vmatprep.subr.mxu0 0.0
  %461 = vmatpush2.msra.mxu0 0.0
  %462 = vmatprep.subr.mxu0 0.0
  %463 = vmatpush2.msra.mxu0 0.0
  %464 = vmatprep.subr.mxu0 0.0
  %465 = vmatpush2.msra.mxu0 0.0
  %466 = vmatprep.subr.mxu0 0.0
  %467 = vmatpush2.msra.mxu0 0.0
  %468 = vmatprep.subr.mxu0 0.0
  %469 = vmatpush2.msra.mxu0 0.0
  %470 = vmatprep.subr.mxu0 0.0
  %471 = vmatpush2.msra.mxu0 0.0
  %472 = vmatprep.subr.mxu0 0.0
  %473 = vmatpush2.msra.mxu0 0.0
  %474 = vmatprep.subr.mxu0 0.0
  %475 = vmatpush2.msra.mxu0 0.0
  %476 = vmatprep.mubr.f32.mxu0 0.0
  %477 = vmatmul.mubr.f32.gmra.mxu0 %v401
  %v478 = vpop.f32.mrf.mxu0
  %v479 = vadd.f32 0.0, %v478
  %v480 = vpop.f32.mrf.mxu0
  %481 = vmatprep.mubr.f32.mxu0 0.0
  %482 = vmatmul.mubr.f32.gmra.mxu0 %v404
  %v483 = vpop.f32.mrf.mxu0
  %v484 = vadd.f32 0.0, %v483
  %v485 = vpop.f32.mrf.mxu0
  %486 = vmatprep.mubr.f32.mxu0 0.0
  %487 = vmatmul.mubr.f32.gmra.mxu0 %v407
  %v488 = vpop.f32.mrf.mxu0
  %v489 = vadd.f32 0.0, %v488
  %v490 = vpop.f32.mrf.mxu0
  %491 = vmatprep.mubr.f32.mxu0 0.0
  %492 = vmatmul.mubr.f32.gmra.mxu0 %v410
  %v493 = vpop.f32.mrf.mxu0
  %v494 = vadd.f32 0.0, %v493
  %v495 = vpop.f32.mrf.mxu0
  %496 = vdwg.mxu0
  %v498 = vsel %vm399, %v23, 0
  %v501 = vsel %vm399, %v24, 0
  %v504 = vsel %vm399, %v25, 0
  %v507 = vsel %vm399, %v26, 0
  %509 = vmatprep.subr.mxu0 0.0
  %510 = vmatpush1.msra.mxu0 0.0
  %511 = vmatprep.subr.mxu0 0.0
  %512 = vmatpush1.msra.mxu0 0.0
  %513 = vmatprep.subr.mxu0 0.0
  %514 = vmatpush1.msra.mxu0 0.0
  %515 = vmatprep.subr.mxu0 0.0
  %516 = vmatpush1.msra.mxu0 0.0
  %517 = vmatprep.subr.mxu0 0.0
  %518 = vmatpush1.msra.mxu0 0.0
  %519 = vmatprep.subr.mxu0 0.0
  %520 = vmatpush1.msra.mxu0 0.0
  %521 = vmatprep.subr.mxu0 0.0
  %522 = vmatpush1.msra.mxu0 0.0
  %523 = vmatprep.subr.mxu0 0.0
  %524 = vmatpush1.msra.mxu0 0.0
  %525 = vmatprep.subr.mxu0 0.0
  %526 = vmatpush1.msra.mxu0 %v369
  %527 = vmatprep.subr.mxu0 0.0
  %528 = vmatpush1.msra.mxu0 %v368
  %529 = vmatprep.subr.mxu0 0.0
  %530 = vmatpush1.msra.mxu0 %v367
  %531 = vmatprep.subr.mxu0 0.0
  %532 = vmatpush1.msra.mxu0 %v366
  %533 = vmatprep.subr.mxu0 0.0
  %534 = vmatpush1.msra.mxu0 %v365
  %535 = vmatprep.subr.mxu0 0.0
  %536 = vmatpush1.msra.mxu0 %v364
  %537 = vmatprep.subr.mxu0 0.0
  %538 = vmatpush1.msra.mxu0 %v363
  %539 = vmatprep.subr.mxu0 0.0
  %540 = vmatpush1.msra.mxu0 %v362
  %541 = vmatprep.subr.mxu0 0.0
  %542 = vmatpush2.msra.mxu0 0.0
  %543 = vmatprep.subr.mxu0 0.0
  %544 = vmatpush2.msra.mxu0 0.0
  %545 = vmatprep.subr.mxu0 0.0
  %546 = vmatpush2.msra.mxu0 0.0
  %547 = vmatprep.subr.mxu0 0.0
  %548 = vmatpush2.msra.mxu0 0.0
  %549 = vmatprep.subr.mxu0 0.0
  %550 = vmatpush2.msra.mxu0 0.0
  %551 = vmatprep.subr.mxu0 0.0
  %552 = vmatpush2.msra.mxu0 0.0
  %553 = vmatprep.subr.mxu0 0.0
  %554 = vmatpush2.msra.mxu0 0.0
  %555 = vmatprep.subr.mxu0 0.0
  %556 = vmatpush2.msra.mxu0 0.0
  %557 = vmatprep.subr.mxu0 0.0
  %558 = vmatpush2.msra.mxu0 0.0
  %559 = vmatprep.subr.mxu0 0.0
  %560 = vmatpush2.msra.mxu0 0.0
  %561 = vmatprep.subr.mxu0 0.0
  %562 = vmatpush2.msra.mxu0 0.0
  %563 = vmatprep.subr.mxu0 0.0
  %564 = vmatpush2.msra.mxu0 0.0
  %565 = vmatprep.subr.mxu0 0.0
  %566 = vmatpush2.msra.mxu0 0.0
  %567 = vmatprep.subr.mxu0 0.0
  %568 = vmatpush2.msra.mxu0 0.0
  %569 = vmatprep.subr.mxu0 0.0
  %570 = vmatpush2.msra.mxu0 0.0
  %571 = vmatprep.subr.mxu0 0.0
  %572 = vmatpush2.msra.mxu0 0.0
  %573 = vmatprep.mubr.f32.mxu0 0.0
  %574 = vmatmul.mubr.f32.gmra.mxu0 %v498
  %v575 = vpop.f32.mrf.mxu0
  %v576 = vadd.f32 %v479, %v575
  %v577 = vpop.f32.mrf.mxu0
  %578 = vmatprep.mubr.f32.mxu0 0.0
  %579 = vmatmul.mubr.f32.gmra.mxu0 %v501
  %v580 = vpop.f32.mrf.mxu0
  %v581 = vadd.f32 %v484, %v580
  %v582 = vpop.f32.mrf.mxu0
  %583 = vmatprep.mubr.f32.mxu0 0.0
  %584 = vmatmul.mubr.f32.gmra.mxu0 %v504
  %v585 = vpop.f32.mrf.mxu0
  %v586 = vadd.f32 %v489, %v585
  %v587 = vpop.f32.mrf.mxu0
  %588 = vmatprep.mubr.f32.mxu0 0.0
  %589 = vmatmul.mubr.f32.gmra.mxu0 %v507
  %v590 = vpop.f32.mrf.mxu0
  %v591 = vadd.f32 %v494, %v590
  %v592 = vpop.f32.mrf.mxu0
  %593 = vdwg.mxu0
  %v594 = vrot.slane %v23, 1
  %v595 = vrot.slane %v24, 1
  %v596 = vrot.slane %v25, 1
  %v597 = vrot.slane %v26, 1
  %vm598 = vcmp.lt.s32.totalorder %v28, 7
  %v599 = vsel %vm598, %v596, %v597
  %v600 = vsel %vm598, %v595, %v596
  %v601 = vsel %vm598, %v594, %v595
  %v602 = vsel %vm598, %v597, %v594
  %v603 = vsel %vm84, 1, 0
  %v604 = vsel %vm85, 1, 0
  %v605 = vsel %vm86, 1, 0
  %v606 = vsel %vm87, 1, 0
  %vm607 = vcmp.eq.s32.totalorder %v603, 1
  %vm608 = vcmp.eq.s32.totalorder %v604, 1
  %vm609 = vcmp.eq.s32.totalorder %v605, 1
  %vm610 = vcmp.eq.s32.totalorder %v606, 1
  %v611 = vsel %vm607, %v601, 0.0
  %v612 = vsel %vm608, %v600, 0.0
  %v613 = vsel %vm609, %v599, 0.0
  %v614 = vsel %vm610, %v602, 0.0
  %s615 = scalar_lea.vmem %s1, 128
  %v616 = vld [vmem:[%s615] sm:$0xff]
  %v617 = vld [vmem:[%s615 + $0x8] sm:$0xff]
  %v618 = vld [vmem:[%s615 + $0x10] sm:$0xff]
  %v619 = vld [vmem:[%s615 + $0x18] sm:$0xff]
  %v620 = vld [vmem:[%s615 + $0x20] sm:$0xff]
  %v621 = vld [vmem:[%s615 + $0x28] sm:$0xff]
  %v622 = vld [vmem:[%s615 + $0x30] sm:$0xff]
  %v623 = vld [vmem:[%s615 + $0x38] sm:$0xff]
  %v625 = vsel %vm399, %v611, 0
  %v628 = vsel %vm399, %v612, 0
  %v631 = vsel %vm399, %v613, 0
  %v634 = vsel %vm399, %v614, 0
  %636 = vmatprep.subr.mxu0 0.0
  %637 = vmatpush1.msra.mxu0 0.0
  %638 = vmatprep.subr.mxu0 0.0
  %639 = vmatpush1.msra.mxu0 0.0
  %640 = vmatprep.subr.mxu0 0.0
  %641 = vmatpush1.msra.mxu0 0.0
  %642 = vmatprep.subr.mxu0 0.0
  %643 = vmatpush1.msra.mxu0 0.0
  %644 = vmatprep.subr.mxu0 0.0
  %645 = vmatpush1.msra.mxu0 0.0
  %646 = vmatprep.subr.mxu0 0.0
  %647 = vmatpush1.msra.mxu0 0.0
  %648 = vmatprep.subr.mxu0 0.0
  %649 = vmatpush1.msra.mxu0 0.0
  %650 = vmatprep.subr.mxu0 0.0
  %651 = vmatpush1.msra.mxu0 0.0
  %652 = vmatprep.subr.mxu0 0.0
  %653 = vmatpush1.msra.mxu0 %v623
  %654 = vmatprep.subr.mxu0 0.0
  %655 = vmatpush1.msra.mxu0 %v622
  %656 = vmatprep.subr.mxu0 0.0
  %657 = vmatpush1.msra.mxu0 %v621
  %658 = vmatprep.subr.mxu0 0.0
  %659 = vmatpush1.msra.mxu0 %v620
  %660 = vmatprep.subr.mxu0 0.0
  %661 = vmatpush1.msra.mxu0 %v619
  %662 = vmatprep.subr.mxu0 0.0
  %663 = vmatpush1.msra.mxu0 %v618
  %664 = vmatprep.subr.mxu0 0.0
  %665 = vmatpush1.msra.mxu0 %v617
  %666 = vmatprep.subr.mxu0 0.0
  %667 = vmatpush1.msra.mxu0 %v616
  %668 = vmatprep.subr.mxu0 0.0
  %669 = vmatpush2.msra.mxu0 0.0
  %670 = vmatprep.subr.mxu0 0.0
  %671 = vmatpush2.msra.mxu0 0.0
  %672 = vmatprep.subr.mxu0 0.0
  %673 = vmatpush2.msra.mxu0 0.0
  %674 = vmatprep.subr.mxu0 0.0
  %675 = vmatpush2.msra.mxu0 0.0
  %676 = vmatprep.subr.mxu0 0.0
  %677 = vmatpush2.msra.mxu0 0.0
  %678 = vmatprep.subr.mxu0 0.0
  %679 = vmatpush2.msra.mxu0 0.0
  %680 = vmatprep.subr.mxu0 0.0
  %681 = vmatpush2.msra.mxu0 0.0
  %682 = vmatprep.subr.mxu0 0.0
  %683 = vmatpush2.msra.mxu0 0.0
  %684 = vmatprep.subr.mxu0 0.0
  %685 = vmatpush2.msra.mxu0 0.0
  %686 = vmatprep.subr.mxu0 0.0
  %687 = vmatpush2.msra.mxu0 0.0
  %688 = vmatprep.subr.mxu0 0.0
  %689 = vmatpush2.msra.mxu0 0.0
  %690 = vmatprep.subr.mxu0 0.0
  %691 = vmatpush2.msra.mxu0 0.0
  %692 = vmatprep.subr.mxu0 0.0
  %693 = vmatpush2.msra.mxu0 0.0
  %694 = vmatprep.subr.mxu0 0.0
  %695 = vmatpush2.msra.mxu0 0.0
  %696 = vmatprep.subr.mxu0 0.0
  %697 = vmatpush2.msra.mxu0 0.0
  %698 = vmatprep.subr.mxu0 0.0
  %699 = vmatpush2.msra.mxu0 0.0
  %700 = vmatprep.mubr.f32.mxu0 0.0
  %701 = vmatmul.mubr.f32.gmra.mxu0 %v625
  %v702 = vpop.f32.mrf.mxu0
  %v703 = vadd.f32 0.0, %v702
  %v704 = vpop.f32.mrf.mxu0
  %705 = vmatprep.mubr.f32.mxu0 0.0
  %706 = vmatmul.mubr.f32.gmra.mxu0 %v628
  %v707 = vpop.f32.mrf.mxu0
  %v708 = vadd.f32 0.0, %v707
  %v709 = vpop.f32.mrf.mxu0
  %710 = vmatprep.mubr.f32.mxu0 0.0
  %711 = vmatmul.mubr.f32.gmra.mxu0 %v631
  %v712 = vpop.f32.mrf.mxu0
  %v713 = vadd.f32 0.0, %v712
  %v714 = vpop.f32.mrf.mxu0
  %715 = vmatprep.mubr.f32.mxu0 0.0
  %716 = vmatmul.mubr.f32.gmra.mxu0 %v634
  %v717 = vpop.f32.mrf.mxu0
  %v718 = vadd.f32 0.0, %v717
  %v719 = vpop.f32.mrf.mxu0
  %720 = vdwg.mxu0
  %v721 = vadd.f32 %v576, %v703
  %v722 = vadd.f32 %v581, %v708
  %v723 = vadd.f32 %v586, %v713
  %v724 = vadd.f32 %v591, %v718
  %v725 = vlaneseq
  %v726 = vshrl.u32 %v725, 7
  %v727 = vsub.s32 0, %v726
  %v728 = vrot.slane %v354, %v727
  %v729 = vadd.f32 %v721, %v728
  %v730 = vadd.f32 %v722, %v728
  %v731 = vadd.f32 %v723, %v728
  %v732 = vadd.f32 %v724, %v728
  %v733 = vadd.f32 %v729, %v730
  %v734 = vadd.f32 %v733, %v731
  %v735 = vadd.f32 %v734, %v732
  %v736 = vrot.slane %v735, 4
  %v737 = vadd.f32 %v735, %v736
  %v738 = vrot.slane %v737, 2
  %v739 = vadd.f32 %v737, %v738
  %v740 = vrot.slane %v739, 1
  %v741 = vadd.f32 %v739, %v740
  %v742 = vmul.f32 %v729, %v729
  %v743 = vmul.f32 %v730, %v730
  %v744 = vmul.f32 %v731, %v731
  %v745 = vmul.f32 %v732, %v732
  %v746 = vadd.f32 %v742, %v743
  %v747 = vadd.f32 %v746, %v744
  %v748 = vadd.f32 %v747, %v745
  %v749 = vrot.slane %v748, 4
  %v750 = vadd.f32 %v748, %v749
  %v751 = vrot.slane %v750, 2
  %v752 = vadd.f32 %v750, %v751
  %v753 = vrot.slane %v752, 1
  %v754 = vadd.f32 %v752, %v753
  %755 = vmatprep.subr.mxu0 0.0
  %756 = vmatpush1.msra.mxu0 %v353
  %757 = vmatprep.subr.mxu0 0.0
  %758 = vmatpush1.msra.mxu0 %v352
  %759 = vmatprep.subr.mxu0 0.0
  %760 = vmatpush1.msra.mxu0 %v351
  %761 = vmatprep.subr.mxu0 0.0
  %762 = vmatpush1.msra.mxu0 %v350
  %763 = vmatprep.subr.mxu0 0.0
  %764 = vmatpush1.msra.mxu0 %v349
  %765 = vmatprep.subr.mxu0 0.0
  %766 = vmatpush1.msra.mxu0 %v348
  %767 = vmatprep.subr.mxu0 0.0
  %768 = vmatpush1.msra.mxu0 %v347
  %769 = vmatprep.subr.mxu0 0.0
  %770 = vmatpush1.msra.mxu0 %v346
  %771 = vmatprep.subr.mxu0 0.0
  %772 = vmatpush1.msra.mxu0 %v345
  %773 = vmatprep.subr.mxu0 0.0
  %774 = vmatpush1.msra.mxu0 %v344
  %775 = vmatprep.subr.mxu0 0.0
  %776 = vmatpush1.msra.mxu0 %v343
  %777 = vmatprep.subr.mxu0 0.0
  %778 = vmatpush1.msra.mxu0 %v342
  %779 = vmatprep.subr.mxu0 0.0
  %780 = vmatpush1.msra.mxu0 %v341
  %781 = vmatprep.subr.mxu0 0.0
  %782 = vmatpush1.msra.mxu0 %v340
  %783 = vmatprep.subr.mxu0 0.0
  %784 = vmatpush1.msra.mxu0 %v339
  %785 = vmatprep.subr.mxu0 0.0
  %786 = vmatpush1.msra.mxu0 %v338
  %787 = vmatprep.subr.mxu0 0.0
  %788 = vmatpush2.msra.mxu0 0.0
  %789 = vmatprep.subr.mxu0 0.0
  %790 = vmatpush2.msra.mxu0 0.0
  %791 = vmatprep.subr.mxu0 0.0
  %792 = vmatpush2.msra.mxu0 0.0
  %793 = vmatprep.subr.mxu0 0.0
  %794 = vmatpush2.msra.mxu0 0.0
  %795 = vmatprep.subr.mxu0 0.0
  %796 = vmatpush2.msra.mxu0 0.0
  %797 = vmatprep.subr.mxu0 0.0
  %798 = vmatpush2.msra.mxu0 0.0
  %799 = vmatprep.subr.mxu0 0.0
  %800 = vmatpush2.msra.mxu0 0.0
  %801 = vmatprep.subr.mxu0 0.0
  %802 = vmatpush2.msra.mxu0 0.0
  %803 = vmatprep.subr.mxu0 0.0
  %804 = vmatpush2.msra.mxu0 0.0
  %805 = vmatprep.subr.mxu0 0.0
  %806 = vmatpush2.msra.mxu0 0.0
  %807 = vmatprep.subr.mxu0 0.0
  %808 = vmatpush2.msra.mxu0 0.0
  %809 = vmatprep.subr.mxu0 0.0
  %810 = vmatpush2.msra.mxu0 0.0
  %811 = vmatprep.subr.mxu0 0.0
  %812 = vmatpush2.msra.mxu0 0.0
  %813 = vmatprep.subr.mxu0 0.0
  %814 = vmatpush2.msra.mxu0 0.0
  %815 = vmatprep.subr.mxu0 0.0
  %816 = vmatpush2.msra.mxu0 0.0
  %817 = vmatprep.subr.mxu0 0.0
  %818 = vmatpush2.msra.mxu0 0.0
  %819 = vmatprep.mubr.f32.mxu0 0.0
  %820 = vmatmul.mubr.f32.gmra.mxu0 %v741
  %v821 = vpop.f32.mrf.mxu0
  %v822 = vadd.f32 0.0, %v821
  %v823 = vpop.f32.mrf.mxu0
  %824 = vdwg.mxu0
  %v825 = vmul.f32 %v822, 0.001953125
  %826 = vmatprep.subr.mxu0 0.0
  %827 = vmatpush1.msra.mxu0 %v353
  %828 = vmatprep.subr.mxu0 0.0
  %829 = vmatpush1.msra.mxu0 %v352
  %830 = vmatprep.subr.mxu0 0.0
  %831 = vmatpush1.msra.mxu0 %v351
  %832 = vmatprep.subr.mxu0 0.0
  %833 = vmatpush1.msra.mxu0 %v350
  %834 = vmatprep.subr.mxu0 0.0
  %835 = vmatpush1.msra.mxu0 %v349
  %836 = vmatprep.subr.mxu0 0.0
  %837 = vmatpush1.msra.mxu0 %v348
  %838 = vmatprep.subr.mxu0 0.0
  %839 = vmatpush1.msra.mxu0 %v347
  %840 = vmatprep.subr.mxu0 0.0
  %841 = vmatpush1.msra.mxu0 %v346
  %842 = vmatprep.subr.mxu0 0.0
  %843 = vmatpush1.msra.mxu0 %v345
  %844 = vmatprep.subr.mxu0 0.0
  %845 = vmatpush1.msra.mxu0 %v344
  %846 = vmatprep.subr.mxu0 0.0
  %847 = vmatpush1.msra.mxu0 %v343
  %848 = vmatprep.subr.mxu0 0.0
  %849 = vmatpush1.msra.mxu0 %v342
  %850 = vmatprep.subr.mxu0 0.0
  %851 = vmatpush1.msra.mxu0 %v341
  %852 = vmatprep.subr.mxu0 0.0
  %853 = vmatpush1.msra.mxu0 %v340
  %854 = vmatprep.subr.mxu0 0.0
  %855 = vmatpush1.msra.mxu0 %v339
  %856 = vmatprep.subr.mxu0 0.0
  %857 = vmatpush1.msra.mxu0 %v338
  %858 = vmatprep.subr.mxu0 0.0
  %859 = vmatpush2.msra.mxu0 0.0
  %860 = vmatprep.subr.mxu0 0.0
  %861 = vmatpush2.msra.mxu0 0.0
  %862 = vmatprep.subr.mxu0 0.0
  %863 = vmatpush2.msra.mxu0 0.0
  %864 = vmatprep.subr.mxu0 0.0
  %865 = vmatpush2.msra.mxu0 0.0
  %866 = vmatprep.subr.mxu0 0.0
  %867 = vmatpush2.msra.mxu0 0.0
  %868 = vmatprep.subr.mxu0 0.0
  %869 = vmatpush2.msra.mxu0 0.0
  %870 = vmatprep.subr.mxu0 0.0
  %871 = vmatpush2.msra.mxu0 0.0
  %872 = vmatprep.subr.mxu0 0.0
  %873 = vmatpush2.msra.mxu0 0.0
  %874 = vmatprep.subr.mxu0 0.0
  %875 = vmatpush2.msra.mxu0 0.0
  %876 = vmatprep.subr.mxu0 0.0
  %877 = vmatpush2.msra.mxu0 0.0
  %878 = vmatprep.subr.mxu0 0.0
  %879 = vmatpush2.msra.mxu0 0.0
  %880 = vmatprep.subr.mxu0 0.0
  %881 = vmatpush2.msra.mxu0 0.0
  %882 = vmatprep.subr.mxu0 0.0
  %883 = vmatpush2.msra.mxu0 0.0
  %884 = vmatprep.subr.mxu0 0.0
  %885 = vmatpush2.msra.mxu0 0.0
  %886 = vmatprep.subr.mxu0 0.0
  %887 = vmatpush2.msra.mxu0 0.0
  %888 = vmatprep.subr.mxu0 0.0
  %889 = vmatpush2.msra.mxu0 0.0
  %890 = vmatprep.mubr.f32.mxu0 0.0
  %891 = vmatmul.mubr.f32.gmra.mxu0 %v754
  %v892 = vpop.f32.mrf.mxu0
  %v893 = vadd.f32 0.0, %v892
  %v894 = vpop.f32.mrf.mxu0
  %895 = vdwg.mxu0
  %v896 = vmul.f32 %v893, 0.001953125
  %v897 = vmul.f32 %v825, %v825
  %v898 = vsub.f32 %v896, %v897
  %v899 = vadd.f32 %v898, 1e-05
  %v900 = vrsqrt.pop %v899
  %v901 = vmul.f32 %v355, %v900
  %v902 = vmul.f32 %v825, %v901
  %v903 = vsub.f32 %v356, %v902
  %v904 = vlaneseq
  %v905 = vshrl.u32 %v904, 7
  %v906 = vsub.s32 0, %v905
  %v907 = vrot.slane %v901, %v906
  %v908 = vmul.f32 %v729, %v907
  %v909 = vmul.f32 %v730, %v907
  %v910 = vmul.f32 %v731, %v907
  %v911 = vmul.f32 %v732, %v907
  %v912 = vlaneseq
  %v913 = vshrl.u32 %v912, 7
  %v914 = vsub.s32 0, %v913
  %v915 = vrot.slane %v903, %v914
  %v916 = vadd.f32 %v908, %v915
  %v917 = vadd.f32 %v909, %v915
  %v918 = vadd.f32 %v910, %v915
  %v919 = vadd.f32 %v911, %v915
  %v920 = vmax.f32 %v916, 0.0
  %v921 = vmax.f32 %v917, 0.0
  %v922 = vmax.f32 %v918, 0.0
  %v923 = vmax.f32 %v919, 0.0
  %s924 = scalar_lea.vmem %s2, 128
  %v925 = vld [vmem:[%s924] sm:$0xff]
  %v926 = vld [vmem:[%s924 + $0x8] sm:$0xff]
  %v927 = vld [vmem:[%s924 + $0x10] sm:$0xff]
  %v928 = vld [vmem:[%s924 + $0x18] sm:$0xff]
  %v929 = vld [vmem:[%s924 + $0x20] sm:$0xff]
  %v930 = vld [vmem:[%s924 + $0x28] sm:$0xff]
  %v931 = vld [vmem:[%s924 + $0x30] sm:$0xff]
  %v932 = vld [vmem:[%s924 + $0x38] sm:$0xff]
  %v933 = vld [vmem:[%s924 + $0x40] sm:$0xff]
  %v934 = vld [vmem:[%s924 + $0x48] sm:$0xff]
  %v935 = vld [vmem:[%s924 + $0x50] sm:$0xff]
  %v936 = vld [vmem:[%s924 + $0x58] sm:$0xff]
  %v937 = vld [vmem:[%s924 + $0x60] sm:$0xff]
  %v938 = vld [vmem:[%s924 + $0x68] sm:$0xff]
  %v939 = vld [vmem:[%s924 + $0x70] sm:$0xff]
  %v940 = vld [vmem:[%s924 + $0x78] sm:$0xff]
  %v941 = vrot.slane %v920, 7
  %v942 = vrot.slane %v921, 7
  %v943 = vrot.slane %v922, 7
  %v944 = vrot.slane %v923, 7
  %v945 = vsel %vm374, %v943, %v944
  %v946 = vsel %vm374, %v942, %v943
  %v947 = vsel %vm374, %v941, %v942
  %v948 = vsel %vm374, %v944, %v941
  %v949 = vsel %vm383, %v948, 0.0
  %v950 = vsel %vm384, %v947, 0.0
  %v951 = vsel %vm385, %v946, 0.0
  %v952 = vsel %vm386, %v945, 0.0
  %v953 = vld [vmem:[%s2] sm:$0xff]
  %v954 = vld [vmem:[%s2 + $0x8] sm:$0xff]
  %v955 = vld [vmem:[%s2 + $0x10] sm:$0xff]
  %v956 = vld [vmem:[%s2 + $0x18] sm:$0xff]
  %v957 = vld [vmem:[%s2 + $0x20] sm:$0xff]
  %v958 = vld [vmem:[%s2 + $0x28] sm:$0xff]
  %v959 = vld [vmem:[%s2 + $0x30] sm:$0xff]
  %v960 = vld [vmem:[%s2 + $0x38] sm:$0xff]
  %v961 = vld [vmem:[%s2 + $0x40] sm:$0xff]
  %v962 = vld [vmem:[%s2 + $0x48] sm:$0xff]
  %v963 = vld [vmem:[%s2 + $0x50] sm:$0xff]
  %v964 = vld [vmem:[%s2 + $0x58] sm:$0xff]
  %v965 = vld [vmem:[%s2 + $0x60] sm:$0xff]
  %v966 = vld [vmem:[%s2 + $0x68] sm:$0xff]
  %v967 = vld [vmem:[%s2 + $0x70] sm:$0xff]
  %v968 = vld [vmem:[%s2 + $0x78] sm:$0xff]
  %969 = vmatprep.subr.mxu0 0.0
  %970 = vmatpush1.msra.mxu0 %v968
  %971 = vmatprep.subr.mxu0 0.0
  %972 = vmatpush1.msra.mxu0 %v967
  %973 = vmatprep.subr.mxu0 0.0
  %974 = vmatpush1.msra.mxu0 %v966
  %975 = vmatprep.subr.mxu0 0.0
  %976 = vmatpush1.msra.mxu0 %v965
  %977 = vmatprep.subr.mxu0 0.0
  %978 = vmatpush1.msra.mxu0 %v964
  %979 = vmatprep.subr.mxu0 0.0
  %980 = vmatpush1.msra.mxu0 %v963
  %981 = vmatprep.subr.mxu0 0.0
  %982 = vmatpush1.msra.mxu0 %v962
  %983 = vmatprep.subr.mxu0 0.0
  %984 = vmatpush1.msra.mxu0 %v961
  %985 = vmatprep.subr.mxu0 0.0
  %986 = vmatpush1.msra.mxu0 %v960
  %987 = vmatprep.subr.mxu0 0.0
  %988 = vmatpush1.msra.mxu0 %v959
  %989 = vmatprep.subr.mxu0 0.0
  %990 = vmatpush1.msra.mxu0 %v958
  %991 = vmatprep.subr.mxu0 0.0
  %992 = vmatpush1.msra.mxu0 %v957
  %993 = vmatprep.subr.mxu0 0.0
  %994 = vmatpush1.msra.mxu0 %v956
  %995 = vmatprep.subr.mxu0 0.0
  %996 = vmatpush1.msra.mxu0 %v955
  %997 = vmatprep.subr.mxu0 0.0
  %998 = vmatpush1.msra.mxu0 %v954
  %999 = vmatprep.subr.mxu0 0.0
  %1000 = vmatpush1.msra.mxu0 %v953
  %1001 = vmatprep.subr.mxu0 0.0
  %1002 = vmatpush2.msra.mxu0 0.0
  %1003 = vmatprep.subr.mxu0 0.0
  %1004 = vmatpush2.msra.mxu0 0.0
  %1005 = vmatprep.subr.mxu0 0.0
  %1006 = vmatpush2.msra.mxu0 0.0
  %1007 = vmatprep.subr.mxu0 0.0
  %1008 = vmatpush2.msra.mxu0 0.0
  %1009 = vmatprep.subr.mxu0 0.0
  %1010 = vmatpush2.msra.mxu0 0.0
  %1011 = vmatprep.subr.mxu0 0.0
  %1012 = vmatpush2.msra.mxu0 0.0
  %1013 = vmatprep.subr.mxu0 0.0
  %1014 = vmatpush2.msra.mxu0 0.0
  %1015 = vmatprep.subr.mxu0 0.0
  %1016 = vmatpush2.msra.mxu0 0.0
  %1017 = vmatprep.subr.mxu0 0.0
  %1018 = vmatpush2.msra.mxu0 0.0
  %1019 = vmatprep.subr.mxu0 0.0
  %1020 = vmatpush2.msra.mxu0 0.0
  %1021 = vmatprep.subr.mxu0 0.0
  %1022 = vmatpush2.msra.mxu0 0.0
  %1023 = vmatprep.subr.mxu0 0.0
  %1024 = vmatpush2.msra.mxu0 0.0
  %1025 = vmatprep.subr.mxu0 0.0
  %1026 = vmatpush2.msra.mxu0 0.0
  %1027 = vmatprep.subr.mxu0 0.0
  %1028 = vmatpush2.msra.mxu0 0.0
  %1029 = vmatprep.subr.mxu0 0.0
  %1030 = vmatpush2.msra.mxu0 0.0
  %1031 = vmatprep.subr.mxu0 0.0
  %1032 = vmatpush2.msra.mxu0 0.0
  %1033 = vmatprep.mubr.f32.mxu0 0.0
  %1034 = vmatmul.mubr.f32.gmra.mxu0 %v949
  %v1035 = vpop.f32.mrf.mxu0
  %v1036 = vadd.f32 0.0, %v1035
  %v1037 = vpop.f32.mrf.mxu0
  %1038 = vmatprep.mubr.f32.mxu0 0.0
  %1039 = vmatmul.mubr.f32.gmra.mxu0 %v950
  %v1040 = vpop.f32.mrf.mxu0
  %v1041 = vadd.f32 0.0, %v1040
  %v1042 = vpop.f32.mrf.mxu0
  %1043 = vmatprep.mubr.f32.mxu0 0.0
  %1044 = vmatmul.mubr.f32.gmra.mxu0 %v951
  %v1045 = vpop.f32.mrf.mxu0
  %v1046 = vadd.f32 0.0, %v1045
  %v1047 = vpop.f32.mrf.mxu0
  %1048 = vmatprep.mubr.f32.mxu0 0.0
  %1049 = vmatmul.mubr.f32.gmra.mxu0 %v952
  %v1050 = vpop.f32.mrf.mxu0
  %v1051 = vadd.f32 0.0, %v1050
  %v1052 = vpop.f32.mrf.mxu0
  %1053 = vdwg.mxu0
  %1054 = vmatprep.subr.mxu0 0.0
  %1055 = vmatpush1.msra.mxu0 %v940
  %1056 = vmatprep.subr.mxu0 0.0
  %1057 = vmatpush1.msra.mxu0 %v939
  %1058 = vmatprep.subr.mxu0 0.0
  %1059 = vmatpush1.msra.mxu0 %v938
  %1060 = vmatprep.subr.mxu0 0.0
  %1061 = vmatpush1.msra.mxu0 %v937
  %1062 = vmatprep.subr.mxu0 0.0
  %1063 = vmatpush1.msra.mxu0 %v936
  %1064 = vmatprep.subr.mxu0 0.0
  %1065 = vmatpush1.msra.mxu0 %v935
  %1066 = vmatprep.subr.mxu0 0.0
  %1067 = vmatpush1.msra.mxu0 %v934
  %1068 = vmatprep.subr.mxu0 0.0
  %1069 = vmatpush1.msra.mxu0 %v933
  %1070 = vmatprep.subr.mxu0 0.0
  %1071 = vmatpush1.msra.mxu0 %v932
  %1072 = vmatprep.subr.mxu0 0.0
  %1073 = vmatpush1.msra.mxu0 %v931
  %1074 = vmatprep.subr.mxu0 0.0
  %1075 = vmatpush1.msra.mxu0 %v930
  %1076 = vmatprep.subr.mxu0 0.0
  %1077 = vmatpush1.msra.mxu0 %v929
  %1078 = vmatprep.subr.mxu0 0.0
  %1079 = vmatpush1.msra.mxu0 %v928
  %1080 = vmatprep.subr.mxu0 0.0
  %1081 = vmatpush1.msra.mxu0 %v927
  %1082 = vmatprep.subr.mxu0 0.0
  %1083 = vmatpush1.msra.mxu0 %v926
  %1084 = vmatprep.subr.mxu0 0.0
  %1085 = vmatpush1.msra.mxu0 %v925
  %1086 = vmatprep.subr.mxu0 0.0
  %1087 = vmatpush2.msra.mxu0 0.0
  %1088 = vmatprep.subr.mxu0 0.0
  %1089 = vmatpush2.msra.mxu0 0.0
  %1090 = vmatprep.subr.mxu0 0.0
  %1091 = vmatpush2.msra.mxu0 0.0
  %1092 = vmatprep.subr.mxu0 0.0
  %1093 = vmatpush2.msra.mxu0 0.0
  %1094 = vmatprep.subr.mxu0 0.0
  %1095 = vmatpush2.msra.mxu0 0.0
  %1096 = vmatprep.subr.mxu0 0.0
  %1097 = vmatpush2.msra.mxu0 0.0
  %1098 = vmatprep.subr.mxu0 0.0
  %1099 = vmatpush2.msra.mxu0 0.0
  %1100 = vmatprep.subr.mxu0 0.0
  %1101 = vmatpush2.msra.mxu0 0.0
  %1102 = vmatprep.subr.mxu0 0.0
  %1103 = vmatpush2.msra.mxu0 0.0
  %1104 = vmatprep.subr.mxu0 0.0
  %1105 = vmatpush2.msra.mxu0 0.0
  %1106 = vmatprep.subr.mxu0 0.0
  %1107 = vmatpush2.msra.mxu0 0.0
  %1108 = vmatprep.subr.mxu0 0.0
  %1109 = vmatpush2.msra.mxu0 0.0
  %1110 = vmatprep.subr.mxu0 0.0
  %1111 = vmatpush2.msra.mxu0 0.0
  %1112 = vmatprep.subr.mxu0 0.0
  %1113 = vmatpush2.msra.mxu0 0.0
  %1114 = vmatprep.subr.mxu0 0.0
  %1115 = vmatpush2.msra.mxu0 0.0
  %1116 = vmatprep.subr.mxu0 0.0
  %1117 = vmatpush2.msra.mxu0 0.0
  %1118 = vmatprep.mubr.f32.mxu0 0.0
  %1119 = vmatmul.mubr.f32.gmra.mxu0 %v920
  %v1120 = vpop.f32.mrf.mxu0
  %v1121 = vadd.f32 %v1036, %v1120
  %v1122 = vpop.f32.mrf.mxu0
  %1123 = vmatprep.mubr.f32.mxu0 0.0
  %1124 = vmatmul.mubr.f32.gmra.mxu0 %v921
  %v1125 = vpop.f32.mrf.mxu0
  %v1126 = vadd.f32 %v1041, %v1125
  %v1127 = vpop.f32.mrf.mxu0
  %1128 = vmatprep.mubr.f32.mxu0 0.0
  %1129 = vmatmul.mubr.f32.gmra.mxu0 %v922
  %v1130 = vpop.f32.mrf.mxu0
  %v1131 = vadd.f32 %v1046, %v1130
  %v1132 = vpop.f32.mrf.mxu0
  %1133 = vmatprep.mubr.f32.mxu0 0.0
  %1134 = vmatmul.mubr.f32.gmra.mxu0 %v923
  %v1135 = vpop.f32.mrf.mxu0
  %v1136 = vadd.f32 %v1051, %v1135
  %v1137 = vpop.f32.mrf.mxu0
  %1138 = vdwg.mxu0
  %v1139 = vrot.slane %v920, 1
  %v1140 = vrot.slane %v921, 1
  %v1141 = vrot.slane %v922, 1
  %v1142 = vrot.slane %v923, 1
  %v1143 = vsel %vm598, %v1141, %v1142
  %v1144 = vsel %vm598, %v1140, %v1141
  %v1145 = vsel %vm598, %v1139, %v1140
  %v1146 = vsel %vm598, %v1142, %v1139
  %v1147 = vsel %vm607, %v1145, 0.0
  %v1148 = vsel %vm608, %v1144, 0.0
  %v1149 = vsel %vm609, %v1143, 0.0
  %v1150 = vsel %vm610, %v1146, 0.0
  %s1151 = scalar_lea.vmem %s2, 256
  %v1152 = vld [vmem:[%s1151] sm:$0xff]
  %v1153 = vld [vmem:[%s1151 + $0x8] sm:$0xff]
  %v1154 = vld [vmem:[%s1151 + $0x10] sm:$0xff]
  %v1155 = vld [vmem:[%s1151 + $0x18] sm:$0xff]
  %v1156 = vld [vmem:[%s1151 + $0x20] sm:$0xff]
  %v1157 = vld [vmem:[%s1151 + $0x28] sm:$0xff]
  %v1158 = vld [vmem:[%s1151 + $0x30] sm:$0xff]
  %v1159 = vld [vmem:[%s1151 + $0x38] sm:$0xff]
  %v1160 = vld [vmem:[%s1151 + $0x40] sm:$0xff]
  %v1161 = vld [vmem:[%s1151 + $0x48] sm:$0xff]
  %v1162 = vld [vmem:[%s1151 + $0x50] sm:$0xff]
  %v1163 = vld [vmem:[%s1151 + $0x58] sm:$0xff]
  %v1164 = vld [vmem:[%s1151 + $0x60] sm:$0xff]
  %v1165 = vld [vmem:[%s1151 + $0x68] sm:$0xff]
  %v1166 = vld [vmem:[%s1151 + $0x70] sm:$0xff]
  %v1167 = vld [vmem:[%s1151 + $0x78] sm:$0xff]
  %1168 = vmatprep.subr.mxu0 0.0
  %1169 = vmatpush1.msra.mxu0 %v1167
  %1170 = vmatprep.subr.mxu0 0.0
  %1171 = vmatpush1.msra.mxu0 %v1166
  %1172 = vmatprep.subr.mxu0 0.0
  %1173 = vmatpush1.msra.mxu0 %v1165
  %1174 = vmatprep.subr.mxu0 0.0
  %1175 = vmatpush1.msra.mxu0 %v1164
  %1176 = vmatprep.subr.mxu0 0.0
  %1177 = vmatpush1.msra.mxu0 %v1163
  %1178 = vmatprep.subr.mxu0 0.0
  %1179 = vmatpush1.msra.mxu0 %v1162
  %1180 = vmatprep.subr.mxu0 0.0
  %1181 = vmatpush1.msra.mxu0 %v1161
  %1182 = vmatprep.subr.mxu0 0.0
  %1183 = vmatpush1.msra.mxu0 %v1160
  %1184 = vmatprep.subr.mxu0 0.0
  %1185 = vmatpush1.msra.mxu0 %v1159
  %1186 = vmatprep.subr.mxu0 0.0
  %1187 = vmatpush1.msra.mxu0 %v1158
  %1188 = vmatprep.subr.mxu0 0.0
  %1189 = vmatpush1.msra.mxu0 %v1157
  %1190 = vmatprep.subr.mxu0 0.0
  %1191 = vmatpush1.msra.mxu0 %v1156
  %1192 = vmatprep.subr.mxu0 0.0
  %1193 = vmatpush1.msra.mxu0 %v1155
  %1194 = vmatprep.subr.mxu0 0.0
  %1195 = vmatpush1.msra.mxu0 %v1154
  %1196 = vmatprep.subr.mxu0 0.0
  %1197 = vmatpush1.msra.mxu0 %v1153
  %1198 = vmatprep.subr.mxu0 0.0
  %1199 = vmatpush1.msra.mxu0 %v1152
  %1200 = vmatprep.subr.mxu0 0.0
  %1201 = vmatpush2.msra.mxu0 0.0
  %1202 = vmatprep.subr.mxu0 0.0
  %1203 = vmatpush2.msra.mxu0 0.0
  %1204 = vmatprep.subr.mxu0 0.0
  %1205 = vmatpush2.msra.mxu0 0.0
  %1206 = vmatprep.subr.mxu0 0.0
  %1207 = vmatpush2.msra.mxu0 0.0
  %1208 = vmatprep.subr.mxu0 0.0
  %1209 = vmatpush2.msra.mxu0 0.0
  %1210 = vmatprep.subr.mxu0 0.0
  %1211 = vmatpush2.msra.mxu0 0.0
  %1212 = vmatprep.subr.mxu0 0.0
  %1213 = vmatpush2.msra.mxu0 0.0
  %1214 = vmatprep.subr.mxu0 0.0
  %1215 = vmatpush2.msra.mxu0 0.0
  %1216 = vmatprep.subr.mxu0 0.0
  %1217 = vmatpush2.msra.mxu0 0.0
  %1218 = vmatprep.subr.mxu0 0.0
  %1219 = vmatpush2.msra.mxu0 0.0
  %1220 = vmatprep.subr.mxu0 0.0
  %1221 = vmatpush2.msra.mxu0 0.0
  %1222 = vmatprep.subr.mxu0 0.0
  %1223 = vmatpush2.msra.mxu0 0.0
  %1224 = vmatprep.subr.mxu0 0.0
  %1225 = vmatpush2.msra.mxu0 0.0
  %1226 = vmatprep.subr.mxu0 0.0
  %1227 = vmatpush2.msra.mxu0 0.0
  %1228 = vmatprep.subr.mxu0 0.0
  %1229 = vmatpush2.msra.mxu0 0.0
  %1230 = vmatprep.subr.mxu0 0.0
  %1231 = vmatpush2.msra.mxu0 0.0
  %1232 = vmatprep.mubr.f32.mxu0 0.0
  %1233 = vmatmul.mubr.f32.gmra.mxu0 %v1147
  %v1234 = vpop.f32.mrf.mxu0
  %v1235 = vadd.f32 0.0, %v1234
  %v1236 = vpop.f32.mrf.mxu0
  %1237 = vmatprep.mubr.f32.mxu0 0.0
  %1238 = vmatmul.mubr.f32.gmra.mxu0 %v1148
  %v1239 = vpop.f32.mrf.mxu0
  %v1240 = vadd.f32 0.0, %v1239
  %v1241 = vpop.f32.mrf.mxu0
  %1242 = vmatprep.mubr.f32.mxu0 0.0
  %1243 = vmatmul.mubr.f32.gmra.mxu0 %v1149
  %v1244 = vpop.f32.mrf.mxu0
  %v1245 = vadd.f32 0.0, %v1244
  %v1246 = vpop.f32.mrf.mxu0
  %1247 = vmatprep.mubr.f32.mxu0 0.0
  %1248 = vmatmul.mubr.f32.gmra.mxu0 %v1150
  %v1249 = vpop.f32.mrf.mxu0
  %v1250 = vadd.f32 0.0, %v1249
  %v1251 = vpop.f32.mrf.mxu0
  %1252 = vdwg.mxu0
  %v1253 = vadd.f32 %v1121, %v1235
  %v1254 = vadd.f32 %v1126, %v1240
  %v1255 = vadd.f32 %v1131, %v1245
  %v1256 = vadd.f32 %v1136, %v1250
  %v1257 = vlaneseq
  %v1258 = vshrl.u32 %v1257, 7
  %v1259 = vsub.s32 0, %v1258
  %v1260 = vrot.slane %v357, %v1259
  %v1261 = vadd.f32 %v1253, %v1260
  %v1262 = vadd.f32 %v1254, %v1260
  %v1263 = vadd.f32 %v1255, %v1260
  %v1264 = vadd.f32 %v1256, %v1260
  %v1265 = vadd.f32 %v1261, %v1262
  %v1266 = vadd.f32 %v1265, %v1263
  %v1267 = vadd.f32 %v1266, %v1264
  %v1268 = vrot.slane %v1267, 4
  %v1269 = vadd.f32 %v1267, %v1268
  %v1270 = vrot.slane %v1269, 2
  %v1271 = vadd.f32 %v1269, %v1270
  %v1272 = vrot.slane %v1271, 1
  %v1273 = vadd.f32 %v1271, %v1272
  %v1274 = vmul.f32 %v1261, %v1261
  %v1275 = vmul.f32 %v1262, %v1262
  %v1276 = vmul.f32 %v1263, %v1263
  %v1277 = vmul.f32 %v1264, %v1264
  %v1278 = vadd.f32 %v1274, %v1275
  %v1279 = vadd.f32 %v1278, %v1276
  %v1280 = vadd.f32 %v1279, %v1277
  %v1281 = vrot.slane %v1280, 4
  %v1282 = vadd.f32 %v1280, %v1281
  %v1283 = vrot.slane %v1282, 2
  %v1284 = vadd.f32 %v1282, %v1283
  %v1285 = vrot.slane %v1284, 1
  %v1286 = vadd.f32 %v1284, %v1285
  %1287 = vmatprep.subr.mxu0 0.0
  %1288 = vmatpush1.msra.mxu0 %v353
  %1289 = vmatprep.subr.mxu0 0.0
  %1290 = vmatpush1.msra.mxu0 %v352
  %1291 = vmatprep.subr.mxu0 0.0
  %1292 = vmatpush1.msra.mxu0 %v351
  %1293 = vmatprep.subr.mxu0 0.0
  %1294 = vmatpush1.msra.mxu0 %v350
  %1295 = vmatprep.subr.mxu0 0.0
  %1296 = vmatpush1.msra.mxu0 %v349
  %1297 = vmatprep.subr.mxu0 0.0
  %1298 = vmatpush1.msra.mxu0 %v348
  %1299 = vmatprep.subr.mxu0 0.0
  %1300 = vmatpush1.msra.mxu0 %v347
  %1301 = vmatprep.subr.mxu0 0.0
  %1302 = vmatpush1.msra.mxu0 %v346
  %1303 = vmatprep.subr.mxu0 0.0
  %1304 = vmatpush1.msra.mxu0 %v345
  %1305 = vmatprep.subr.mxu0 0.0
  %1306 = vmatpush1.msra.mxu0 %v344
  %1307 = vmatprep.subr.mxu0 0.0
  %1308 = vmatpush1.msra.mxu0 %v343
  %1309 = vmatprep.subr.mxu0 0.0
  %1310 = vmatpush1.msra.mxu0 %v342
  %1311 = vmatprep.subr.mxu0 0.0
  %1312 = vmatpush1.msra.mxu0 %v341
  %1313 = vmatprep.subr.mxu0 0.0
  %1314 = vmatpush1.msra.mxu0 %v340
  %1315 = vmatprep.subr.mxu0 0.0
  %1316 = vmatpush1.msra.mxu0 %v339
  %1317 = vmatprep.subr.mxu0 0.0
  %1318 = vmatpush1.msra.mxu0 %v338
  %1319 = vmatprep.subr.mxu0 0.0
  %1320 = vmatpush2.msra.mxu0 0.0
  %1321 = vmatprep.subr.mxu0 0.0
  %1322 = vmatpush2.msra.mxu0 0.0
  %1323 = vmatprep.subr.mxu0 0.0
  %1324 = vmatpush2.msra.mxu0 0.0
  %1325 = vmatprep.subr.mxu0 0.0
  %1326 = vmatpush2.msra.mxu0 0.0
  %1327 = vmatprep.subr.mxu0 0.0
  %1328 = vmatpush2.msra.mxu0 0.0
  %1329 = vmatprep.subr.mxu0 0.0
  %1330 = vmatpush2.msra.mxu0 0.0
  %1331 = vmatprep.subr.mxu0 0.0
  %1332 = vmatpush2.msra.mxu0 0.0
  %1333 = vmatprep.subr.mxu0 0.0
  %1334 = vmatpush2.msra.mxu0 0.0
  %1335 = vmatprep.subr.mxu0 0.0
  %1336 = vmatpush2.msra.mxu0 0.0
  %1337 = vmatprep.subr.mxu0 0.0
  %1338 = vmatpush2.msra.mxu0 0.0
  %1339 = vmatprep.subr.mxu0 0.0
  %1340 = vmatpush2.msra.mxu0 0.0
  %1341 = vmatprep.subr.mxu0 0.0
  %1342 = vmatpush2.msra.mxu0 0.0
  %1343 = vmatprep.subr.mxu0 0.0
  %1344 = vmatpush2.msra.mxu0 0.0
  %1345 = vmatprep.subr.mxu0 0.0
  %1346 = vmatpush2.msra.mxu0 0.0
  %1347 = vmatprep.subr.mxu0 0.0
  %1348 = vmatpush2.msra.mxu0 0.0
  %1349 = vmatprep.subr.mxu0 0.0
  %1350 = vmatpush2.msra.mxu0 0.0
  %1351 = vmatprep.mubr.f32.mxu0 0.0
  %1352 = vmatmul.mubr.f32.gmra.mxu0 %v1273
  %v1353 = vpop.f32.mrf.mxu0
  %v1354 = vadd.f32 0.0, %v1353
  %v1355 = vpop.f32.mrf.mxu0
  %1356 = vdwg.mxu0
  %v1357 = vmul.f32 %v1354, 0.001953125
  %1358 = vmatprep.subr.mxu0 0.0
  %1359 = vmatpush1.msra.mxu0 %v353
  %1360 = vmatprep.subr.mxu0 0.0
  %1361 = vmatpush1.msra.mxu0 %v352
  %1362 = vmatprep.subr.mxu0 0.0
  %1363 = vmatpush1.msra.mxu0 %v351
  %1364 = vmatprep.subr.mxu0 0.0
  %1365 = vmatpush1.msra.mxu0 %v350
  %1366 = vmatprep.subr.mxu0 0.0
  %1367 = vmatpush1.msra.mxu0 %v349
  %1368 = vmatprep.subr.mxu0 0.0
  %1369 = vmatpush1.msra.mxu0 %v348
  %1370 = vmatprep.subr.mxu0 0.0
  %1371 = vmatpush1.msra.mxu0 %v347
  %1372 = vmatprep.subr.mxu0 0.0
  %1373 = vmatpush1.msra.mxu0 %v346
  %1374 = vmatprep.subr.mxu0 0.0
  %1375 = vmatpush1.msra.mxu0 %v345
  %1376 = vmatprep.subr.mxu0 0.0
  %1377 = vmatpush1.msra.mxu0 %v344
  %1378 = vmatprep.subr.mxu0 0.0
  %1379 = vmatpush1.msra.mxu0 %v343
  %1380 = vmatprep.subr.mxu0 0.0
  %1381 = vmatpush1.msra.mxu0 %v342
  %1382 = vmatprep.subr.mxu0 0.0
  %1383 = vmatpush1.msra.mxu0 %v341
  %1384 = vmatprep.subr.mxu0 0.0
  %1385 = vmatpush1.msra.mxu0 %v340
  %1386 = vmatprep.subr.mxu0 0.0
  %1387 = vmatpush1.msra.mxu0 %v339
  %1388 = vmatprep.subr.mxu0 0.0
  %1389 = vmatpush1.msra.mxu0 %v338
  %1390 = vmatprep.subr.mxu0 0.0
  %1391 = vmatpush2.msra.mxu0 0.0
  %1392 = vmatprep.subr.mxu0 0.0
  %1393 = vmatpush2.msra.mxu0 0.0
  %1394 = vmatprep.subr.mxu0 0.0
  %1395 = vmatpush2.msra.mxu0 0.0
  %1396 = vmatprep.subr.mxu0 0.0
  %1397 = vmatpush2.msra.mxu0 0.0
  %1398 = vmatprep.subr.mxu0 0.0
  %1399 = vmatpush2.msra.mxu0 0.0
  %1400 = vmatprep.subr.mxu0 0.0
  %1401 = vmatpush2.msra.mxu0 0.0
  %1402 = vmatprep.subr.mxu0 0.0
  %1403 = vmatpush2.msra.mxu0 0.0
  %1404 = vmatprep.subr.mxu0 0.0
  %1405 = vmatpush2.msra.mxu0 0.0
  %1406 = vmatprep.subr.mxu0 0.0
  %1407 = vmatpush2.msra.mxu0 0.0
  %1408 = vmatprep.subr.mxu0 0.0
  %1409 = vmatpush2.msra.mxu0 0.0
  %1410 = vmatprep.subr.mxu0 0.0
  %1411 = vmatpush2.msra.mxu0 0.0
  %1412 = vmatprep.subr.mxu0 0.0
  %1413 = vmatpush2.msra.mxu0 0.0
  %1414 = vmatprep.subr.mxu0 0.0
  %1415 = vmatpush2.msra.mxu0 0.0
  %1416 = vmatprep.subr.mxu0 0.0
  %1417 = vmatpush2.msra.mxu0 0.0
  %1418 = vmatprep.subr.mxu0 0.0
  %1419 = vmatpush2.msra.mxu0 0.0
  %1420 = vmatprep.subr.mxu0 0.0
  %1421 = vmatpush2.msra.mxu0 0.0
  %1422 = vmatprep.mubr.f32.mxu0 0.0
  %1423 = vmatmul.mubr.f32.gmra.mxu0 %v1286
  %v1424 = vpop.f32.mrf.mxu0
  %v1425 = vadd.f32 0.0, %v1424
  %v1426 = vpop.f32.mrf.mxu0
  %1427 = vdwg.mxu0
  %v1428 = vmul.f32 %v1425, 0.001953125
  %v1429 = vmul.f32 %v1357, %v1357
  %v1430 = vsub.f32 %v1428, %v1429
  %v1431 = vadd.f32 %v1430, 1e-05
  %v1432 = vrsqrt.pop %v1431
  %v1433 = vmul.f32 %v358, %v1432
  %v1434 = vmul.f32 %v1357, %v1433
  %v1435 = vsub.f32 %v359, %v1434
  %v1436 = vlaneseq
  %v1437 = vshrl.u32 %v1436, 7
  %v1438 = vsub.s32 0, %v1437
  %v1439 = vrot.slane %v1433, %v1438
  %v1440 = vmul.f32 %v1261, %v1439
  %v1441 = vmul.f32 %v1262, %v1439
  %v1442 = vmul.f32 %v1263, %v1439
  %v1443 = vmul.f32 %v1264, %v1439
  %v1444 = vlaneseq
  %v1445 = vshrl.u32 %v1444, 7
  %v1446 = vsub.s32 0, %v1445
  %v1447 = vrot.slane %v1435, %v1446
  %v1448 = vadd.f32 %v1440, %v1447
  %v1449 = vadd.f32 %v1441, %v1447
  %v1450 = vadd.f32 %v1442, %v1447
  %v1451 = vadd.f32 %v1443, %v1447
  %v1452 = vld [vmem:[%s3] sm:$0xff]
  %v1453 = vld [vmem:[%s3 + $0x8] sm:$0xff]
  %v1454 = vld [vmem:[%s3 + $0x10] sm:$0xff]
  %v1455 = vld [vmem:[%s3 + $0x18] sm:$0xff]
  %v1456 = vld [vmem:[%s3 + $0x20] sm:$0xff]
  %v1457 = vld [vmem:[%s3 + $0x28] sm:$0xff]
  %v1458 = vld [vmem:[%s3 + $0x30] sm:$0xff]
  %v1459 = vld [vmem:[%s3 + $0x38] sm:$0xff]
  %v1460 = vld [vmem:[%s3 + $0x40] sm:$0xff]
  %v1461 = vld [vmem:[%s3 + $0x48] sm:$0xff]
  %v1462 = vld [vmem:[%s3 + $0x50] sm:$0xff]
  %v1463 = vld [vmem:[%s3 + $0x58] sm:$0xff]
  %v1464 = vld [vmem:[%s3 + $0x60] sm:$0xff]
  %v1465 = vld [vmem:[%s3 + $0x68] sm:$0xff]
  %v1466 = vld [vmem:[%s3 + $0x70] sm:$0xff]
  %v1467 = vld [vmem:[%s3 + $0x78] sm:$0xff]
  %v1468 = vlaneseq
  %v1469 = vshrl.u32 %v1468, 7
  %v1470 = vsub.s32 0, %v1469
  %v1471 = vrot.slane %v360, %v1470
  %1472 = vmatprep.subr.mxu0 0.0
  %1473 = vmatpush1.msra.mxu0 %v1467
  %1474 = vmatprep.subr.mxu0 0.0
  %1475 = vmatpush1.msra.mxu0 %v1466
  %1476 = vmatprep.subr.mxu0 0.0
  %1477 = vmatpush1.msra.mxu0 %v1465
  %1478 = vmatprep.subr.mxu0 0.0
  %1479 = vmatpush1.msra.mxu0 %v1464
  %1480 = vmatprep.subr.mxu0 0.0
  %1481 = vmatpush1.msra.mxu0 %v1463
  %1482 = vmatprep.subr.mxu0 0.0
  %1483 = vmatpush1.msra.mxu0 %v1462
  %1484 = vmatprep.subr.mxu0 0.0
  %1485 = vmatpush1.msra.mxu0 %v1461
  %1486 = vmatprep.subr.mxu0 0.0
  %1487 = vmatpush1.msra.mxu0 %v1460
  %1488 = vmatprep.subr.mxu0 0.0
  %1489 = vmatpush1.msra.mxu0 %v1459
  %1490 = vmatprep.subr.mxu0 0.0
  %1491 = vmatpush1.msra.mxu0 %v1458
  %1492 = vmatprep.subr.mxu0 0.0
  %1493 = vmatpush1.msra.mxu0 %v1457
  %1494 = vmatprep.subr.mxu0 0.0
  %1495 = vmatpush1.msra.mxu0 %v1456
  %1496 = vmatprep.subr.mxu0 0.0
  %1497 = vmatpush1.msra.mxu0 %v1455
  %1498 = vmatprep.subr.mxu0 0.0
  %1499 = vmatpush1.msra.mxu0 %v1454
  %1500 = vmatprep.subr.mxu0 0.0
  %1501 = vmatpush1.msra.mxu0 %v1453
  %1502 = vmatprep.subr.mxu0 0.0
  %1503 = vmatpush1.msra.mxu0 %v1452
  %1504 = vmatprep.subr.mxu0 0.0
  %1505 = vmatpush2.msra.mxu0 0.0
  %1506 = vmatprep.subr.mxu0 0.0
  %1507 = vmatpush2.msra.mxu0 0.0
  %1508 = vmatprep.subr.mxu0 0.0
  %1509 = vmatpush2.msra.mxu0 0.0
  %1510 = vmatprep.subr.mxu0 0.0
  %1511 = vmatpush2.msra.mxu0 0.0
  %1512 = vmatprep.subr.mxu0 0.0
  %1513 = vmatpush2.msra.mxu0 0.0
  %1514 = vmatprep.subr.mxu0 0.0
  %1515 = vmatpush2.msra.mxu0 0.0
  %1516 = vmatprep.subr.mxu0 0.0
  %1517 = vmatpush2.msra.mxu0 0.0
  %1518 = vmatprep.subr.mxu0 0.0
  %1519 = vmatpush2.msra.mxu0 0.0
  %1520 = vmatprep.subr.mxu0 0.0
  %1521 = vmatpush2.msra.mxu0 0.0
  %1522 = vmatprep.subr.mxu0 0.0
  %1523 = vmatpush2.msra.mxu0 0.0
  %1524 = vmatprep.subr.mxu0 0.0
  %1525 = vmatpush2.msra.mxu0 0.0
  %1526 = vmatprep.subr.mxu0 0.0
  %1527 = vmatpush2.msra.mxu0 0.0
  %1528 = vmatprep.subr.mxu0 0.0
  %1529 = vmatpush2.msra.mxu0 0.0
  %1530 = vmatprep.subr.mxu0 0.0
  %1531 = vmatpush2.msra.mxu0 0.0
  %1532 = vmatprep.subr.mxu0 0.0
  %1533 = vmatpush2.msra.mxu0 0.0
  %1534 = vmatprep.subr.mxu0 0.0
  %1535 = vmatpush2.msra.mxu0 0.0
  %1536 = vmatprep.mubr.f32.mxu0 0.0
  %1537 = vmatmul.mubr.f32.gmra.mxu0 %v1448
  %v1538 = vpop.f32.mrf.mxu0
  %v1539 = vadd.f32 %v1471, %v1538
  %v1540 = vpop.f32.mrf.mxu0
  %1541 = vmatprep.mubr.f32.mxu0 0.0
  %1542 = vmatmul.mubr.f32.gmra.mxu0 %v1449
  %v1543 = vpop.f32.mrf.mxu0
  %v1544 = vadd.f32 %v1471, %v1543
  %v1545 = vpop.f32.mrf.mxu0
  %1546 = vmatprep.mubr.f32.mxu0 0.0
  %1547 = vmatmul.mubr.f32.gmra.mxu0 %v1450
  %v1548 = vpop.f32.mrf.mxu0
  %v1549 = vadd.f32 %v1471, %v1548
  %v1550 = vpop.f32.mrf.mxu0
  %1551 = vmatprep.mubr.f32.mxu0 0.0
  %1552 = vmatmul.mubr.f32.gmra.mxu0 %v1451
  %v1553 = vpop.f32.mrf.mxu0
  %v1554 = vadd.f32 %v1471, %v1553
  %v1555 = vpop.f32.mrf.mxu0
  %1556 = vdwg.mxu0
  %v1557 = vxor.u32 %v1539, 2147483648
  %v1558 = vxor.u32 %v1544, 2147483648
  %v1559 = vxor.u32 %v1549, 2147483648
  %v1560 = vxor.u32 %v1554, 2147483648
  %v1561 = vmul.f32 %v1557, 1.442695
  %v1562 = vpow.pop %v1561
  %v1563 = vmul.f32 %v1558, 1.442695
  %v1564 = vpow.pop %v1563
  %v1565 = vmul.f32 %v1559, 1.442695
  %v1566 = vpow.pop %v1565
  %v1567 = vmul.f32 %v1560, 1.442695
  %v1568 = vpow.pop %v1567
  %v1569 = vadd.f32 %v1562, 1.0
  %v1570 = vadd.f32 %v1564, 1.0
  %v1571 = vadd.f32 %v1566, 1.0
  %v1572 = vadd.f32 %v1568, 1.0
  %v1573 = vrcp.pop %v1569
  %v1574 = vmul.f32 1.0, %v1573
  %v1575 = vrcp.pop %v1570
  %v1576 = vmul.f32 1.0, %v1575
  %v1577 = vrcp.pop %v1571
  %v1578 = vmul.f32 1.0, %v1577
  %v1579 = vrcp.pop %v1572
  %v1580 = vmul.f32 1.0, %v1579
  %v1581 = vld [vmem:[%s4 + $0x7] sm:$0x1]
  %v1582 = vld [vmem:[%s5] sm:$0xff]
  %v1583 = vld [vmem:[%s5 + $0x8] sm:$0xff]
  %v1584 = vld [vmem:[%s5 + $0x10] sm:$0xff]
  %v1585 = vld [vmem:[%s5 + $0x18] sm:$0xff]
  %v1586 = vld [vmem:[%s5 + $0x20] sm:$0xff]
  %v1587 = vld [vmem:[%s5 + $0x28] sm:$0xff]
  %v1588 = vld [vmem:[%s5 + $0x30] sm:$0xff]
  %v1589 = vld [vmem:[%s5 + $0x38] sm:$0xff]
  %v1590 = vlaneseq
  %v1591 = vshrl.u32 %v1590, 7
  %v1592 = vsub.s32 0, %v1591
  %v1593 = vrot.slane %v1581, %v1592
  %1594 = vmatprep.subr.mxu0 0.0
  %1595 = vmatpush1.msra.mxu0 0.0
  %1596 = vmatprep.subr.mxu0 0.0
  %1597 = vmatpush1.msra.mxu0 0.0
  %1598 = vmatprep.subr.mxu0 0.0
  %1599 = vmatpush1.msra.mxu0 0.0
  %1600 = vmatprep.subr.mxu0 0.0
  %1601 = vmatpush1.msra.mxu0 0.0
  %1602 = vmatprep.subr.mxu0 0.0
  %1603 = vmatpush1.msra.mxu0 0.0
  %1604 = vmatprep.subr.mxu0 0.0
  %1605 = vmatpush1.msra.mxu0 0.0
  %1606 = vmatprep.subr.mxu0 0.0
  %1607 = vmatpush1.msra.mxu0 0.0
  %1608 = vmatprep.subr.mxu0 0.0
  %1609 = vmatpush1.msra.mxu0 0.0
  %1610 = vmatprep.subr.mxu0 0.0
  %1611 = vmatpush1.msra.mxu0 %v1589
  %1612 = vmatprep.subr.mxu0 0.0
  %1613 = vmatpush1.msra.mxu0 %v1588
  %1614 = vmatprep.subr.mxu0 0.0
  %1615 = vmatpush1.msra.mxu0 %v1587
  %1616 = vmatprep.subr.mxu0 0.0
  %1617 = vmatpush1.msra.mxu0 %v1586
  %1618 = vmatprep.subr.mxu0 0.0
  %1619 = vmatpush1.msra.mxu0 %v1585
  %1620 = vmatprep.subr.mxu0 0.0
  %1621 = vmatpush1.msra.mxu0 %v1584
  %1622 = vmatprep.subr.mxu0 0.0
  %1623 = vmatpush1.msra.mxu0 %v1583
  %1624 = vmatprep.subr.mxu0 0.0
  %1625 = vmatpush1.msra.mxu0 %v1582
  %1626 = vmatprep.subr.mxu0 0.0
  %1627 = vmatpush2.msra.mxu0 0.0
  %1628 = vmatprep.subr.mxu0 0.0
  %1629 = vmatpush2.msra.mxu0 0.0
  %1630 = vmatprep.subr.mxu0 0.0
  %1631 = vmatpush2.msra.mxu0 0.0
  %1632 = vmatprep.subr.mxu0 0.0
  %1633 = vmatpush2.msra.mxu0 0.0
  %1634 = vmatprep.subr.mxu0 0.0
  %1635 = vmatpush2.msra.mxu0 0.0
  %1636 = vmatprep.subr.mxu0 0.0
  %1637 = vmatpush2.msra.mxu0 0.0
  %1638 = vmatprep.subr.mxu0 0.0
  %1639 = vmatpush2.msra.mxu0 0.0
  %1640 = vmatprep.subr.mxu0 0.0
  %1641 = vmatpush2.msra.mxu0 0.0
  %1642 = vmatprep.subr.mxu0 0.0
  %1643 = vmatpush2.msra.mxu0 0.0
  %1644 = vmatprep.subr.mxu0 0.0
  %1645 = vmatpush2.msra.mxu0 0.0
  %1646 = vmatprep.subr.mxu0 0.0
  %1647 = vmatpush2.msra.mxu0 0.0
  %1648 = vmatprep.subr.mxu0 0.0
  %1649 = vmatpush2.msra.mxu0 0.0
  %1650 = vmatprep.subr.mxu0 0.0
  %1651 = vmatpush2.msra.mxu0 0.0
  %1652 = vmatprep.subr.mxu0 0.0
  %1653 = vmatpush2.msra.mxu0 0.0
  %1654 = vmatprep.subr.mxu0 0.0
  %1655 = vmatpush2.msra.mxu0 0.0
  %1656 = vmatprep.subr.mxu0 0.0
  %1657 = vmatpush2.msra.mxu0 0.0
  %1658 = vmatprep.mubr.f32.mxu0 0.0
  %1659 = vmatmul.mubr.f32.gmra.mxu0 %v498
  %v1660 = vpop.f32.mrf.mxu0
  %v1661 = vadd.f32 %v1593, %v1660
  %v1662 = vpop.f32.mrf.mxu0
  %1663 = vmatprep.mubr.f32.mxu0 0.0
  %1664 = vmatmul.mubr.f32.gmra.mxu0 %v501
  %v1665 = vpop.f32.mrf.mxu0
  %v1666 = vadd.f32 %v1593, %v1665
  %v1667 = vpop.f32.mrf.mxu0
  %1668 = vmatprep.mubr.f32.mxu0 0.0
  %1669 = vmatmul.mubr.f32.gmra.mxu0 %v504
  %v1670 = vpop.f32.mrf.mxu0
  %v1671 = vadd.f32 %v1593, %v1670
  %v1672 = vpop.f32.mrf.mxu0
  %1673 = vmatprep.mubr.f32.mxu0 0.0
  %1674 = vmatmul.mubr.f32.gmra.mxu0 %v507
  %v1675 = vpop.f32.mrf.mxu0
  %v1676 = vadd.f32 %v1593, %v1675
  %v1677 = vpop.f32.mrf.mxu0
  %1678 = vdwg.mxu0
  %v1679 = vmul.f32 %v1448, %v1574
  %v1680 = vmul.f32 %v1449, %v1576
  %v1681 = vmul.f32 %v1450, %v1578
  %v1682 = vmul.f32 %v1451, %v1580
  %v1683 = vadd.f32 %v1679, %v1661
  %v1684 = vadd.f32 %v1680, %v1666
  %v1685 = vadd.f32 %v1681, %v1671
  %v1686 = vadd.f32 %v1682, %v1676
  %v1687 = vmax.f32 %v1683, 0.0
  %v1688 = vmax.f32 %v1684, 0.0
  %v1689 = vmax.f32 %v1685, 0.0
  %v1690 = vmax.f32 %v1686, 0.0
  %1691 = vst [vmem:[%s6] sm:$0xff] %v1687
  %1692 = vst [vmem:[%s6 + $0x8] sm:$0xff] %v1688
  %1693 = vst [vmem:[%s6 + $0x10] sm:$0xff] %v1689
  %1694 = vst [vmem:[%s6 + $0x18] sm:$0xff] %v1690
  // Predicated region
  $region26: #{gated_residual_block.1} parent=0 // pred_check
    _
  $region27: #{gated_residual_block.1} parent=0 // pred_check_branch
    %1696 = sbr.rel (0) target = $region29
  $region28: #{gated_residual_block.1} parent=0 // pred_region
    _
  $region29: #{gated_residual_block.1} parent=0 // pred_fallthru
    _
  // Predicated region
  $region30: #{gated_residual_block.1} parent=0 // pred_check
    _
  $region31: #{gated_residual_block.1} parent=0 // pred_check_branch
    %1698 = sbr.rel (0) target = $region33
  $region32: #{gated_residual_block.1} parent=0 // pred_region
    _
  $region33: #{gated_residual_block.1} parent=0 // pred_fallthru
    _

</llo_original>
